<compile_context>
chip_gen: v5e
topology: v5e:2x2
jax: 0.10.0
libtpu: 0.0.40
codegen_flags: <defaults>
</compile_context>

<pallas_src>
import functools

import jax
import jax.numpy as jnp
from jax import lax
from jax.experimental import pallas as pl
from jax.experimental.pallas import tpu as pltpu


# ----------------------------- shared helpers ------------------------------

def _layernorm(v, g, b, eps=1e-5):
    mu = jnp.mean(v, axis=-1, keepdims=True)
    var = jnp.mean((v - mu) ** 2, axis=-1, keepdims=True)
    return (v - mu) * lax.rsqrt(var + eps) * g + b


# ------------------------------ fused kernel -------------------------------

def _act_encoder_kernel(x_ref, pos_ref, bias_ref,
                        wqk_ref, bqk_ref, wv_ref, bv_ref,
                        wo_ref, bo_ref, w1_ref, b1_ref, w2_ref, b2_ref,
                        g1_ref, beta1_ref, g2_ref, beta2_ref,
                        out_ref, *, n_heads, pre_norm):
    layer = pl.program_id(0)

    # Initialize the resident activation carry from the input on the first layer.
    @pl.when(layer == 0)
    def _():
        out_ref[...] = x_ref[...]

    x = out_ref[...]          # (R, D) carry, R = B*S (resident across the layer axis)
    pos = pos_ref[...]        # (R, D)
    bias = bias_ref[...]      # (R, R) additive mask: block-diag batch + key padding

    R, D = x.shape
    Dh = D // n_heads
    scale = 1.0 / (Dh ** 0.5)

    g1 = g1_ref[0]
    beta1 = beta1_ref[0]
    g2 = g2_ref[0]
    beta2 = beta2_ref[0]

    skip = x
    xin = _layernorm(x, g1, beta1) if pre_norm else x
    qk_in = xin + pos

    # Fused Q+K projection (one MXU matmul, 2D-wide lane-dense output) + V projection.
    qk = jnp.dot(qk_in, wqk_ref[0], preferred_element_type=jnp.float32) + bqk_ref[0]   # (R, 2D)
    v = jnp.dot(xin, wv_ref[0], preferred_element_type=jnp.float32) + bv_ref[0]        # (R, D)
    wo_t = wo_ref[0]                                                                    # (D, D) = Wo.T

    # Multi-head attention over ALL batches at once (packed (R, R) scores per head;
    # the block-diagonal bias keeps batches independent). The per-head output
    # projection slice is accumulated instead of concatenating heads.
    attn = None
    for h in range(n_heads):          # static, tiny H — each iter covers every batch
        lo = h * Dh
        qh = qk[:, lo:lo + Dh] * scale
        kh = qk[:, D + lo:D + lo + Dh]
        vh = v[:, lo:lo + Dh]
        s = lax.dot_general(qh, kh, (((1,), (1,)), ((), ())),
                            preferred_element_type=jnp.float32) + bias                 # (R, R)
        s = s - jnp.max(s, axis=-1, keepdims=True)
        p = jnp.exp(s)
        p = p * pl.reciprocal(jnp.sum(p, axis=-1, keepdims=True), approx=True)
        ctx = jnp.dot(p, vh, preferred_element_type=jnp.float32)                       # (R, Dh)
        contrib = jnp.dot(ctx, wo_t[lo:lo + Dh, :], preferred_element_type=jnp.float32)
        attn = contrib if attn is None else attn + contrib
    attn = attn + bo_ref[0]

    # dropout1 is identity in eval mode
    x1 = skip + attn
    if pre_norm:
        skip2 = x1
        xm = _layernorm(x1, g2, beta2)
    else:
        xm = _layernorm(x1, g1, beta1)
        skip2 = xm

    h1 = jnp.maximum(jnp.dot(xm, w1_ref[0], preferred_element_type=jnp.float32) + b1_ref[0], 0.0)
    y = jnp.dot(h1, w2_ref[0], preferred_element_type=jnp.float32) + b2_ref[0]

    x2 = skip2 + y
    if not pre_norm:
        x2 = _layernorm(x2, g2, beta2)
    out_ref[...] = x2


# --------------------------- parameter preparation --------------------------

def _stack_layer_params(layer_params, D):
    """Pre-transpose / pre-split per-layer weights and stack them along a leading L axis."""
    cols = {k: [] for k in ['wqk', 'bqk', 'wv', 'bv', 'wo', 'bo',
                            'w1', 'b1', 'w2', 'b2', 'g1', 'beta1', 'g2', 'beta2']}
    for p in layer_params:
        wqkv = p['wqkv']                       # (3D, D) PyTorch in_proj layout
        bqkv = p['bqkv'].reshape(-1)           # (3D,)
        cols['wqk'].append(jnp.concatenate([wqkv[:D].T, wqkv[D:2 * D].T], axis=1))   # (D, 2D)
        cols['bqk'].append(bqkv[:2 * D][None, :])                                    # (1, 2D)
        cols['wv'].append(wqkv[2 * D:].T)                                            # (D, D)
        cols['bv'].append(bqkv[2 * D:][None, :])                                     # (1, D)
        cols['wo'].append(p['wo'].T)                                                 # (D, D)
        cols['bo'].append(p['bo'].reshape(1, D))
        cols['w1'].append(p['w1'].T)                                                 # (D, DFF)
        cols['b1'].append(p['b1'].reshape(1, -1))
        cols['w2'].append(p['w2'].T)                                                 # (DFF, D)
        cols['b2'].append(p['b2'].reshape(1, D))
        cols['g1'].append(p['g1'].reshape(1, D))
        cols['beta1'].append(p['beta1'].reshape(1, D))
        cols['g2'].append(p['g2'].reshape(1, D))
        cols['beta2'].append(p['beta2'].reshape(1, D))
    return {k: jnp.stack(v, axis=0).astype(jnp.float32) for k, v in cols.items()}


_PARAM_ORDER = ['wqk', 'bqk', 'wv', 'bv', 'wo', 'bo',
                'w1', 'b1', 'w2', 'b2', 'g1', 'beta1', 'g2', 'beta2']


# ------------------------------ pallas wrapper ------------------------------

def act_encoder_forward(x_sbd, pos_embed, key_padding_mask, layer_params,
                        *, n_heads, pre_norm=False, final_norm=None):
    """Matches ACTEncoder.forward.

    x_sbd:            (S, B, D)  seq-first like PyTorch MultiheadAttention
    pos_embed:        (S, 1, D) or (S, B, D) or None
    key_padding_mask: (B, S) bool, True = padded key
    """
    S, B, D = x_sbd.shape
    R = B * S
    L = len(layer_params)

    x2d = jnp.transpose(x_sbd, (1, 0, 2)).reshape(R, D).astype(jnp.float32)
    if pos_embed is None:
        pos2d = jnp.zeros((R, D), jnp.float32)
    else:
        pos2d = jnp.broadcast_to(jnp.transpose(pos_embed, (1, 0, 2)),
                                 (B, S, D)).reshape(R, D).astype(jnp.float32)

    # Packed-attention additive bias: forbid cross-batch keys and padded keys.
    batch_ids = jnp.arange(R, dtype=jnp.int32) // S
    allowed = batch_ids[:, None] == batch_ids[None, :]
    if key_padding_mask is not None:
        allowed = allowed & jnp.logical_not(key_padding_mask.reshape(R))[None, :]
    attn_bias = jnp.where(allowed, 0.0, -1e9).astype(jnp.float32)       # (R, R)

    sp = _stack_layer_params(layer_params, D)

    def resident(arr):        # constant index_map: DMA'd once, resident for all layers
        n = arr.ndim
        return pl.BlockSpec(arr.shape, lambda l, n=n: (0,) * n)

    def per_layer(arr):       # one layer slice per grid step
        n = arr.ndim - 1
        return pl.BlockSpec((1,) + arr.shape[1:], lambda l, n=n: (l,) + (0,) * n)

    kernel = functools.partial(_act_encoder_kernel, n_heads=n_heads, pre_norm=pre_norm)
    out2d = pl.pallas_call(
        kernel,
        out_shape=jax.ShapeDtypeStruct((R, D), jnp.float32),
        grid=(L,),
        in_specs=[resident(x2d), resident(pos2d), resident(attn_bias)]
                 + [per_layer(sp[k]) for k in _PARAM_ORDER],
        out_specs=pl.BlockSpec((R, D), lambda l: (0, 0)),
        compiler_params=pltpu.CompilerParams(dimension_semantics=("arbitrary",)),
    )(x2d, pos2d, attn_bias, *[sp[k] for k in _PARAM_ORDER])

    x = out2d.reshape(B, S, D)
    if pre_norm and final_norm is not None:
        # final LayerNorm (only active when pre_norm=True; Identity otherwise)
        x = _layernorm(x, final_norm['g'], final_norm['b'])
    return jnp.transpose(x, (1, 0, 2))                                   # back to (S, B, D)


# ------------------------------- parameters --------------------------------

def init_params(key, dim_model, n_layers, dim_ff):
    layers = []
    for _ in range(n_layers):
        key, *ks = jax.random.split(key, 11)
        layers.append({
            'wqkv': 0.05 * jax.random.normal(ks[0], (3 * dim_model, dim_model), jnp.float32),
            'bqkv': 0.01 * jax.random.normal(ks[1], (1, 3 * dim_model), jnp.float32),
            'wo':   0.05 * jax.random.normal(ks[2], (dim_model, dim_model), jnp.float32),
            'bo':   0.01 * jax.random.normal(ks[3], (1, dim_model), jnp.float32),
            'w1':   0.05 * jax.random.normal(ks[4], (dim_ff, dim_model), jnp.float32),
            'b1':   0.01 * jax.random.normal(ks[5], (1, dim_ff), jnp.float32),
            'w2':   0.05 * jax.random.normal(ks[6], (dim_model, dim_ff), jnp.float32),
            'b2':   0.01 * jax.random.normal(ks[7], (1, dim_model), jnp.float32),
            'g1':   1.0 + 0.1 * jax.random.normal(ks[8], (1, dim_model), jnp.float32),
            'beta1': 0.1 * jax.random.normal(ks[9], (1, dim_model), jnp.float32),
            'g2':   jnp.full((1, dim_model), 1.05, jnp.float32),
            'beta2': jnp.full((1, dim_model), 0.02, jnp.float32),
        })
    return layers


# ------------------------- pure-JAX reference model -------------------------

def _ref_layer(x, pos, mask_bias, p, n_heads, pre_norm):
    B, S, D = x.shape
    Dh = D // n_heads
    skip = x
    xin = _layernorm(x, p['g1'], p['beta1']) if pre_norm else x
    qk = xin + pos
    wqkv, bqkv = p['wqkv'], p['bqkv'][0]
    q = qk @ wqkv[:D].T + bqkv[:D]
    k = qk @ wqkv[D:2 * D].T + bqkv[D:2 * D]
    v = xin @ wqkv[2 * D:].T + bqkv[2 * D:]
    q = q.reshape(B, S, n_heads, Dh).transpose(0, 2, 1, 3) / (Dh ** 0.5)
    k = k.reshape(B, S, n_heads, Dh).transpose(0, 2, 1, 3)
    v = v.reshape(B, S, n_heads, Dh).transpose(0, 2, 1, 3)
    s = jnp.einsum('bhqd,bhkd->bhqk', q, k) + mask_bias[:, :, None, :]
    a = jax.nn.softmax(s, axis=-1)
    o = jnp.einsum('bhqk,bhkd->bhqd', a, v).transpose(0, 2, 1, 3).reshape(B, S, D)
    o = o @ p['wo'].T + p['bo'][0]
    x1 = skip + o
    if pre_norm:
        skip2 = x1
        xm = _layernorm(x1, p['g2'], p['beta2'])
    else:
        xm = _layernorm(x1, p['g1'], p['beta1'])
        skip2 = xm
    h1 = jnp.maximum(xm @ p['w1'].T + p['b1'][0], 0.0)
    y = h1 @ p['w2'].T + p['b2'][0]
    x2 = skip2 + y
    if not pre_norm:
        x2 = _layernorm(x2, p['g2'], p['beta2'])
    return x2


def ref_forward(x_sbd, pos_embed, key_padding_mask, layer_params, n_heads, pre_norm=False):
    S, B, D = x_sbd.shape
    x = jnp.transpose(x_sbd, (1, 0, 2))
    pos = jnp.broadcast_to(jnp.transpose(pos_embed, (1, 0, 2)), (B, S, D))
    mask_bias = jnp.where(key_padding_mask, -1e9, 0.0).astype(jnp.float32)[:, None, :]
    for p in layer_params:
        x = _ref_layer(x, pos, mask_bias, p, n_heads, pre_norm)
    return jnp.transpose(x, (1, 0, 2))


# ----------------------------------- main -----------------------------------

if __name__ == "__main__":
    # ACTEncoder(dim_model=32, n_layers=2, pre_norm=False,
    #            layer_kwargs=dict(n_heads=4, dropout=0.0, dim_feedforward=64,
    #                              feedforward_activation='relu'))
    B, S, D, H, DFF, L = 2, 8, 32, 4, 64, 2
    PRE_NORM = False  # default in ACTEncoder; final norm = Identity

    key = jax.random.PRNGKey(0)
    kx, kp, kw = jax.random.split(key, 3)
    x = jax.random.normal(kx, (S, B, D), jnp.float32)          # (seq, batch, dim) PyTorch MHA layout
    pos_embed = jax.random.normal(kp, (S, 1, D), jnp.float32)  # broadcast over batch like ACT pos_embed
    key_padding_mask = jnp.zeros((B, S), dtype=bool).at[1, -2:].set(True)

    params = init_params(kw, D, L, DFF)

    fwd = jax.jit(functools.partial(act_encoder_forward, n_heads=H, pre_norm=PRE_NORM))
    out = jax.block_until_ready(fwd(x, pos_embed, key_padding_mask, params))

    ref = ref_forward(x, pos_embed, key_padding_mask, params, H, PRE_NORM)
    assert out.shape == (S, B, D)
    # NOTE: kernel softmax uses approx EUP reciprocal -> tolerance slightly looser than f32 exact.
    assert jnp.allclose(out, ref, atol=5e-3, rtol=5e-3), "mismatch vs pure-JAX reference"

    print("KERNEL_OK")
</pallas_src>

<mosaic_0001>
module attributes {stable_mosaic.version = 11 : i64} {
  func.func @_act_encoder_kernel(%arg0: i32, %arg1: memref<16x32xf32, #tpu.memory_space<vmem>>, %arg2: memref<16x32xf32, #tpu.memory_space<vmem>>, %arg3: memref<16x16xf32, #tpu.memory_space<vmem>>, %arg4: memref<1x32x64xf32, #tpu.memory_space<vmem>>, %arg5: memref<1x1x64xf32, #tpu.memory_space<vmem>>, %arg6: memref<1x32x32xf32, #tpu.memory_space<vmem>>, %arg7: memref<1x1x32xf32, #tpu.memory_space<vmem>>, %arg8: memref<1x32x32xf32, #tpu.memory_space<vmem>>, %arg9: memref<1x1x32xf32, #tpu.memory_space<vmem>>, %arg10: memref<1x32x64xf32, #tpu.memory_space<vmem>>, %arg11: memref<1x1x64xf32, #tpu.memory_space<vmem>>, %arg12: memref<1x64x32xf32, #tpu.memory_space<vmem>>, %arg13: memref<1x1x32xf32, #tpu.memory_space<vmem>>, %arg14: memref<1x1x32xf32, #tpu.memory_space<vmem>>, %arg15: memref<1x1x32xf32, #tpu.memory_space<vmem>>, %arg16: memref<1x1x32xf32, #tpu.memory_space<vmem>>, %arg17: memref<1x1x32xf32, #tpu.memory_space<vmem>>, %arg18: memref<16x32xf32, #tpu.memory_space<vmem>>) attributes {dimension_semantics = [#tpu.dimension_semantics<arbitrary>], iteration_bounds = array<i64: 2>, scalar_prefetch = 0 : i64, scratch_operands = 0 : i64, tpu.core_type = #tpu.core_type<tc>, window_params = [{pipeline_mode = #tpu.pipeline_mode<synchronous>, transform_indices = @transform_0, window_bounds = array<i64: 16, 32>}, {pipeline_mode = #tpu.pipeline_mode<synchronous>, transform_indices = @transform_1, window_bounds = array<i64: 16, 32>}, {pipeline_mode = #tpu.pipeline_mode<synchronous>, transform_indices = @transform_2, window_bounds = array<i64: 16, 16>}, {transform_indices = @transform_3, window_bounds = array<i64: 1, 32, 64>}, {transform_indices = @transform_4, window_bounds = array<i64: 1, 1, 64>}, {transform_indices = @transform_5, window_bounds = array<i64: 1, 32, 32>}, {transform_indices = @transform_6, window_bounds = array<i64: 1, 1, 32>}, {transform_indices = @transform_7, window_bounds = array<i64: 1, 32, 32>}, {transform_indices = @transform_8, window_bounds = array<i64: 1, 1, 32>}, {transform_indices = @transform_9, window_bounds = array<i64: 1, 32, 64>}, {transform_indices = @transform_10, window_bounds = array<i64: 1, 1, 64>}, {transform_indices = @transform_11, window_bounds = array<i64: 1, 64, 32>}, {transform_indices = @transform_12, window_bounds = array<i64: 1, 1, 32>}, {transform_indices = @transform_13, window_bounds = array<i64: 1, 1, 32>}, {transform_indices = @transform_14, window_bounds = array<i64: 1, 1, 32>}, {transform_indices = @transform_15, window_bounds = array<i64: 1, 1, 32>}, {transform_indices = @transform_16, window_bounds = array<i64: 1, 1, 32>}, {pipeline_mode = #tpu.pipeline_mode<synchronous>, transform_indices = @transform_17, window_bounds = array<i64: 16, 32>}]} {
    %c0_i32 = arith.constant 0 : i32
    %0 = arith.cmpi eq, %arg0, %c0_i32 : i32
    %1 = arith.extui %0 : i1 to i32
    %c0_i32_0 = arith.constant 0 : i32
    %2 = arith.cmpi ne, %1, %c0_i32_0 : i32
    scf.if %2 {
      %c0_88 = arith.constant 0 : index
      %c0_89 = arith.constant 0 : index
      %181 = vector.load %arg1[%c0_88, %c0_89] : memref<16x32xf32, #tpu.memory_space<vmem>>, vector<16x32xf32>
      %c0_90 = arith.constant 0 : index
      %c0_91 = arith.constant 0 : index
      %182 = vector.load %arg18[%c0_90, %c0_91] : memref<16x32xf32, #tpu.memory_space<vmem>>, vector<16x32xf32>
      tpu.vector_store %arg18[%c0_90, %c0_91], %181 {strides = array<i32>} : memref<16x32xf32, #tpu.memory_space<vmem>>, vector<16x32xf32>,
    } else {
    }
    %c0 = arith.constant 0 : index
    %c0_1 = arith.constant 0 : index
    %3 = vector.load %arg18[%c0, %c0_1] : memref<16x32xf32, #tpu.memory_space<vmem>>, vector<16x32xf32>
    %c0_2 = arith.constant 0 : index
    %c0_3 = arith.constant 0 : index
    %4 = vector.load %arg2[%c0_2, %c0_3] : memref<16x32xf32, #tpu.memory_space<vmem>>, vector<16x32xf32>
    %c0_4 = arith.constant 0 : index
    %c0_5 = arith.constant 0 : index
    %5 = vector.load %arg3[%c0_4, %c0_5] : memref<16x16xf32, #tpu.memory_space<vmem>>, vector<16x16xf32>
    %c0_6 = arith.constant 0 : index
    %c0_7 = arith.constant 0 : index
    %c0_8 = arith.constant 0 : index
    %6 = vector.load %arg14[%c0_6, %c0_7, %c0_8] : memref<1x1x32xf32, #tpu.memory_space<vmem>>, vector<1x1x32xf32>
    %7 = vector.shape_cast %6 : vector<1x1x32xf32> to vector<1x32xf32>
    %c0_9 = arith.constant 0 : index
    %c0_10 = arith.constant 0 : index
    %c0_11 = arith.constant 0 : index
    %8 = vector.load %arg15[%c0_9, %c0_10, %c0_11] : memref<1x1x32xf32, #tpu.memory_space<vmem>>, vector<1x1x32xf32>
    %9 = vector.shape_cast %8 : vector<1x1x32xf32> to vector<1x32xf32>
    %c0_12 = arith.constant 0 : index
    %c0_13 = arith.constant 0 : index
    %c0_14 = arith.constant 0 : index
    %10 = vector.load %arg16[%c0_12, %c0_13, %c0_14] : memref<1x1x32xf32, #tpu.memory_space<vmem>>, vector<1x1x32xf32>
    %11 = vector.shape_cast %10 : vector<1x1x32xf32> to vector<1x32xf32>
    %c0_15 = arith.constant 0 : index
    %c0_16 = arith.constant 0 : index
    %c0_17 = arith.constant 0 : index
    %12 = vector.load %arg17[%c0_15, %c0_16, %c0_17] : memref<1x1x32xf32, #tpu.memory_space<vmem>>, vector<1x1x32xf32>
    %13 = vector.shape_cast %12 : vector<1x1x32xf32> to vector<1x32xf32>
    %14 = arith.addf %3, %4 : vector<16x32xf32>
    %c0_18 = arith.constant 0 : index
    %c0_19 = arith.constant 0 : index
    %c0_20 = arith.constant 0 : index
    %15 = vector.load %arg4[%c0_18, %c0_19, %c0_20] : memref<1x32x64xf32, #tpu.memory_space<vmem>>, vector<1x32x64xf32>
    %16 = vector.shape_cast %15 : vector<1x32x64xf32> to vector<32x64xf32>
    %cst = arith.constant dense<0.000000e+00> : vector<16x64xf32>
    %17 = tpu.matmul %14, %16, %cst {dimension_numbers = #tpu.dot_dimension_numbers<[1], [0], [0], [1], [0, 0, 1, 1], [], []>} : vector<16x32xf32>, vector<32x64xf32>, vector<16x64xf32> -> vector<16x64xf32>
    %c0_21 = arith.constant 0 : index
    %c0_22 = arith.constant 0 : index
    %c0_23 = arith.constant 0 : index
    %18 = vector.load %arg5[%c0_21, %c0_22, %c0_23] : memref<1x1x64xf32, #tpu.memory_space<vmem>>, vector<1x1x64xf32>
    %19 = vector.shape_cast %18 : vector<1x1x64xf32> to vector<1x64xf32>
    %20 = vector.broadcast %19 : vector<1x64xf32> to vector<16x64xf32>
    %21 = arith.addf %17, %20 : vector<16x64xf32>
    %c0_24 = arith.constant 0 : index
    %c0_25 = arith.constant 0 : index
    %c0_26 = arith.constant 0 : index
    %22 = vector.load %arg6[%c0_24, %c0_25, %c0_26] : memref<1x32x32xf32, #tpu.memory_space<vmem>>, vector<1x32x32xf32>
    %23 = vector.shape_cast %22 : vector<1x32x32xf32> to vector<32x32xf32>
    %cst_27 = arith.constant dense<0.000000e+00> : vector<16x32xf32>
    %24 = tpu.matmul %3, %23, %cst_27 {dimension_numbers = #tpu.dot_dimension_numbers<[1], [0], [0], [1], [0, 0, 1, 1], [], []>} : vector<16x32xf32>, vector<32x32xf32>, vector<16x32xf32> -> vector<16x32xf32>
    %c0_28 = arith.constant 0 : index
    %c0_29 = arith.constant 0 : index
    %c0_30 = arith.constant 0 : index
    %25 = vector.load %arg7[%c0_28, %c0_29, %c0_30] : memref<1x1x32xf32, #tpu.memory_space<vmem>>, vector<1x1x32xf32>
    %26 = vector.shape_cast %25 : vector<1x1x32xf32> to vector<1x32xf32>
    %27 = vector.broadcast %26 : vector<1x32xf32> to vector<16x32xf32>
    %28 = arith.addf %24, %27 : vector<16x32xf32>
    %c0_31 = arith.constant 0 : index
    %c0_32 = arith.constant 0 : index
    %c0_33 = arith.constant 0 : index
    %29 = vector.load %arg8[%c0_31, %c0_32, %c0_33] : memref<1x32x32xf32, #tpu.memory_space<vmem>>, vector<1x32x32xf32>
    %30 = vector.shape_cast %29 : vector<1x32x32xf32> to vector<32x32xf32>
    %31 = vector.extract_strided_slice %21 {offsets = [0, 0], sizes = [16, 8], strides = [1, 1]} : vector<16x64xf32> to vector<16x8xf32>
    %cst_34 = arith.constant 0.353553385 : f32
    %32 = vector.broadcast %cst_34 : f32 to vector<16x8xf32>
    %33 = arith.mulf %31, %32 : vector<16x8xf32>
    %34 = vector.extract_strided_slice %21 {offsets = [0, 32], sizes = [16, 8], strides = [1, 1]} : vector<16x64xf32> to vector<16x8xf32>
    %35 = vector.extract_strided_slice %28 {offsets = [0, 0], sizes = [16, 8], strides = [1, 1]} : vector<16x32xf32> to vector<16x8xf32>
    %cst_35 = arith.constant dense<0.000000e+00> : vector<16x16xf32>
    %36 = tpu.matmul %33, %34, %cst_35 {dimension_numbers = #tpu.dot_dimension_numbers<[1], [1], [0], [0], [0, 0, 1, 0], [], []>} : vector<16x8xf32>, vector<16x8xf32>, vector<16x16xf32> -> vector<16x16xf32>
    %37 = arith.addf %36, %5 : vector<16x16xf32>
    %cst_36 = arith.constant dense<0xFF800000> : vector<16xf32>
    %38 = vector.multi_reduction <maximumf>, %37, %cst_36 [1] : vector<16x16xf32> to vector<16xf32>
    %39 = vector.shape_cast %38 : vector<16xf32> to vector<16x1xf32>
    %40 = vector.broadcast %39 : vector<16x1xf32> to vector<16x16xf32>
    %41 = arith.subf %37, %40 : vector<16x16xf32>
    %42 = math.exp %41 : vector<16x16xf32>
    %cst_37 = arith.constant dense<0.000000e+00> : vector<16xf32>
    %43 = vector.multi_reduction <add>, %42, %cst_37 [1] : vector<16x16xf32> to vector<16xf32>
    %44 = vector.shape_cast %43 : vector<16xf32> to vector<16x1xf32>
    %45 = tpu.reciprocal %44 {approx = true} : vector<16x1xf32> -> vector<16x1xf32>
    %46 = vector.broadcast %45 : vector<16x1xf32> to vector<16x16xf32>
    %47 = arith.mulf %42, %46 : vector<16x16xf32>
    %cst_38 = arith.constant dense<0.000000e+00> : vector<16x8xf32>
    %48 = tpu.matmul %47, %35, %cst_38 {dimension_numbers = #tpu.dot_dimension_numbers<[1], [0], [0], [1], [0, 0, 1, 1], [], []>} : vector<16x16xf32>, vector<16x8xf32>, vector<16x8xf32> -> vector<16x8xf32>
    %49 = vector.extract_strided_slice %30 {offsets = [0, 0], sizes = [8, 32], strides = [1, 1]} : vector<32x32xf32> to vector<8x32xf32>
    %cst_39 = arith.constant dense<0.000000e+00> : vector<16x32xf32>
    %50 = tpu.matmul %48, %49, %cst_39 {dimension_numbers = #tpu.dot_dimension_numbers<[1], [0], [0], [1], [0, 0, 1, 1], [], []>} : vector<16x8xf32>, vector<8x32xf32>, vector<16x32xf32> -> vector<16x32xf32>
    %51 = vector.extract_strided_slice %21 {offsets = [0, 8], sizes = [16, 8], strides = [1, 1]} : vector<16x64xf32> to vector<16x8xf32>
    %cst_40 = arith.constant 0.353553385 : f32
    %52 = vector.broadcast %cst_40 : f32 to vector<16x8xf32>
    %53 = arith.mulf %51, %52 : vector<16x8xf32>
    %54 = vector.extract_strided_slice %21 {offsets = [0, 40], sizes = [16, 8], strides = [1, 1]} : vector<16x64xf32> to vector<16x8xf32>
    %55 = vector.extract_strided_slice %28 {offsets = [0, 8], sizes = [16, 8], strides = [1, 1]} : vector<16x32xf32> to vector<16x8xf32>
    %cst_41 = arith.constant dense<0.000000e+00> : vector<16x16xf32>
    %56 = tpu.matmul %53, %54, %cst_41 {dimension_numbers = #tpu.dot_dimension_numbers<[1], [1], [0], [0], [0, 0, 1, 0], [], []>} : vector<16x8xf32>, vector<16x8xf32>, vector<16x16xf32> -> vector<16x16xf32>
    %57 = arith.addf %56, %5 : vector<16x16xf32>
    %cst_42 = arith.constant dense<0xFF800000> : vector<16xf32>
    %58 = vector.multi_reduction <maximumf>, %57, %cst_42 [1] : vector<16x16xf32> to vector<16xf32>
    %59 = vector.shape_cast %58 : vector<16xf32> to vector<16x1xf32>
    %60 = vector.broadcast %59 : vector<16x1xf32> to vector<16x16xf32>
    %61 = arith.subf %57, %60 : vector<16x16xf32>
    %62 = math.exp %61 : vector<16x16xf32>
    %cst_43 = arith.constant dense<0.000000e+00> : vector<16xf32>
    %63 = vector.multi_reduction <add>, %62, %cst_43 [1] : vector<16x16xf32> to vector<16xf32>
    %64 = vector.shape_cast %63 : vector<16xf32> to vector<16x1xf32>
    %65 = tpu.reciprocal %64 {approx = true} : vector<16x1xf32> -> vector<16x1xf32>
    %66 = vector.broadcast %65 : vector<16x1xf32> to vector<16x16xf32>
    %67 = arith.mulf %62, %66 : vector<16x16xf32>
    %cst_44 = arith.constant dense<0.000000e+00> : vector<16x8xf32>
    %68 = tpu.matmul %67, %55, %cst_44 {dimension_numbers = #tpu.dot_dimension_numbers<[1], [0], [0], [1], [0, 0, 1, 1], [], []>} : vector<16x16xf32>, vector<16x8xf32>, vector<16x8xf32> -> vector<16x8xf32>
    %69 = vector.extract_strided_slice %30 {offsets = [8, 0], sizes = [8, 32], strides = [1, 1]} : vector<32x32xf32> to vector<8x32xf32>
    %cst_45 = arith.constant dense<0.000000e+00> : vector<16x32xf32>
    %70 = tpu.matmul %68, %69, %cst_45 {dimension_numbers = #tpu.dot_dimension_numbers<[1], [0], [0], [1], [0, 0, 1, 1], [], []>} : vector<16x8xf32>, vector<8x32xf32>, vector<16x32xf32> -> vector<16x32xf32>
    %71 = arith.addf %50, %70 : vector<16x32xf32>
    %72 = vector.extract_strided_slice %21 {offsets = [0, 16], sizes = [16, 8], strides = [1, 1]} : vector<16x64xf32> to vector<16x8xf32>
    %cst_46 = arith.constant 0.353553385 : f32
    %73 = vector.broadcast %cst_46 : f32 to vector<16x8xf32>
    %74 = arith.mulf %72, %73 : vector<16x8xf32>
    %75 = vector.extract_strided_slice %21 {offsets = [0, 48], sizes = [16, 8], strides = [1, 1]} : vector<16x64xf32> to vector<16x8xf32>
    %76 = vector.extract_strided_slice %28 {offsets = [0, 16], sizes = [16, 8], strides = [1, 1]} : vector<16x32xf32> to vector<16x8xf32>
    %cst_47 = arith.constant dense<0.000000e+00> : vector<16x16xf32>
    %77 = tpu.matmul %74, %75, %cst_47 {dimension_numbers = #tpu.dot_dimension_numbers<[1], [1], [0], [0], [0, 0, 1, 0], [], []>} : vector<16x8xf32>, vector<16x8xf32>, vector<16x16xf32> -> vector<16x16xf32>
    %78 = arith.addf %77, %5 : vector<16x16xf32>
    %cst_48 = arith.constant dense<0xFF800000> : vector<16xf32>
    %79 = vector.multi_reduction <maximumf>, %78, %cst_48 [1] : vector<16x16xf32> to vector<16xf32>
    %80 = vector.shape_cast %79 : vector<16xf32> to vector<16x1xf32>
    %81 = vector.broadcast %80 : vector<16x1xf32> to vector<16x16xf32>
    %82 = arith.subf %78, %81 : vector<16x16xf32>
    %83 = math.exp %82 : vector<16x16xf32>
    %cst_49 = arith.constant dense<0.000000e+00> : vector<16xf32>
    %84 = vector.multi_reduction <add>, %83, %cst_49 [1] : vector<16x16xf32> to vector<16xf32>
    %85 = vector.shape_cast %84 : vector<16xf32> to vector<16x1xf32>
    %86 = tpu.reciprocal %85 {approx = true} : vector<16x1xf32> -> vector<16x1xf32>
    %87 = vector.broadcast %86 : vector<16x1xf32> to vector<16x16xf32>
    %88 = arith.mulf %83, %87 : vector<16x16xf32>
    %cst_50 = arith.constant dense<0.000000e+00> : vector<16x8xf32>
    %89 = tpu.matmul %88, %76, %cst_50 {dimension_numbers = #tpu.dot_dimension_numbers<[1], [0], [0], [1], [0, 0, 1, 1], [], []>} : vector<16x16xf32>, vector<16x8xf32>, vector<16x8xf32> -> vector<16x8xf32>
    %90 = vector.extract_strided_slice %30 {offsets = [16, 0], sizes = [8, 32], strides = [1, 1]} : vector<32x32xf32> to vector<8x32xf32>
    %cst_51 = arith.constant dense<0.000000e+00> : vector<16x32xf32>
    %91 = tpu.matmul %89, %90, %cst_51 {dimension_numbers = #tpu.dot_dimension_numbers<[1], [0], [0], [1], [0, 0, 1, 1], [], []>} : vector<16x8xf32>, vector<8x32xf32>, vector<16x32xf32> -> vector<16x32xf32>
    %92 = arith.addf %71, %91 : vector<16x32xf32>
    %93 = vector.extract_strided_slice %21 {offsets = [0, 24], sizes = [16, 8], strides = [1, 1]} : vector<16x64xf32> to vector<16x8xf32>
    %cst_52 = arith.constant 0.353553385 : f32
    %94 = vector.broadcast %cst_52 : f32 to vector<16x8xf32>
    %95 = arith.mulf %93, %94 : vector<16x8xf32>
    %96 = vector.extract_strided_slice %21 {offsets = [0, 56], sizes = [16, 8], strides = [1, 1]} : vector<16x64xf32> to vector<16x8xf32>
    %97 = vector.extract_strided_slice %28 {offsets = [0, 24], sizes = [16, 8], strides = [1, 1]} : vector<16x32xf32> to vector<16x8xf32>
    %cst_53 = arith.constant dense<0.000000e+00> : vector<16x16xf32>
    %98 = tpu.matmul %95, %96, %cst_53 {dimension_numbers = #tpu.dot_dimension_numbers<[1], [1], [0], [0], [0, 0, 1, 0], [], []>} : vector<16x8xf32>, vector<16x8xf32>, vector<16x16xf32> -> vector<16x16xf32>
    %99 = arith.addf %98, %5 : vector<16x16xf32>
    %cst_54 = arith.constant dense<0xFF800000> : vector<16xf32>
    %100 = vector.multi_reduction <maximumf>, %99, %cst_54 [1] : vector<16x16xf32> to vector<16xf32>
    %101 = vector.shape_cast %100 : vector<16xf32> to vector<16x1xf32>
    %102 = vector.broadcast %101 : vector<16x1xf32> to vector<16x16xf32>
    %103 = arith.subf %99, %102 : vector<16x16xf32>
    %104 = math.exp %103 : vector<16x16xf32>
    %cst_55 = arith.constant dense<0.000000e+00> : vector<16xf32>
    %105 = vector.multi_reduction <add>, %104, %cst_55 [1] : vector<16x16xf32> to vector<16xf32>
    %106 = vector.shape_cast %105 : vector<16xf32> to vector<16x1xf32>
    %107 = tpu.reciprocal %106 {approx = true} : vector<16x1xf32> -> vector<16x1xf32>
    %108 = vector.broadcast %107 : vector<16x1xf32> to vector<16x16xf32>
    %109 = arith.mulf %104, %108 : vector<16x16xf32>
    %cst_56 = arith.constant dense<0.000000e+00> : vector<16x8xf32>
    %110 = tpu.matmul %109, %97, %cst_56 {dimension_numbers = #tpu.dot_dimension_numbers<[1], [0], [0], [1], [0, 0, 1, 1], [], []>} : vector<16x16xf32>, vector<16x8xf32>, vector<16x8xf32> -> vector<16x8xf32>
    %111 = vector.extract_strided_slice %30 {offsets = [24, 0], sizes = [8, 32], strides = [1, 1]} : vector<32x32xf32> to vector<8x32xf32>
    %cst_57 = arith.constant dense<0.000000e+00> : vector<16x32xf32>
    %112 = tpu.matmul %110, %111, %cst_57 {dimension_numbers = #tpu.dot_dimension_numbers<[1], [0], [0], [1], [0, 0, 1, 1], [], []>} : vector<16x8xf32>, vector<8x32xf32>, vector<16x32xf32> -> vector<16x32xf32>
    %113 = arith.addf %92, %112 : vector<16x32xf32>
    %c0_58 = arith.constant 0 : index
    %c0_59 = arith.constant 0 : index
    %c0_60 = arith.constant 0 : index
    %114 = vector.load %arg9[%c0_58, %c0_59, %c0_60] : memref<1x1x32xf32, #tpu.memory_space<vmem>>, vector<1x1x32xf32>
    %115 = vector.shape_cast %114 : vector<1x1x32xf32> to vector<1x32xf32>
    %116 = vector.broadcast %115 : vector<1x32xf32> to vector<16x32xf32>
    %117 = arith.addf %113, %116 : vector<16x32xf32>
    %118 = arith.addf %3, %117 : vector<16x32xf32>
    %cst_61 = arith.constant dense<0.000000e+00> : vector<16xf32>
    %119 = vector.multi_reduction <add>, %118, %cst_61 [1] : vector<16x32xf32> to vector<16xf32>
    %120 = vector.shape_cast %119 : vector<16xf32> to vector<16x1xf32>
    %cst_62 = arith.constant 3.200000e+01 : f32
    %121 = vector.broadcast %cst_62 : f32 to vector<16x1xf32>
    %122 = arith.divf %120, %121 : vector<16x1xf32>
    %123 = vector.broadcast %122 : vector<16x1xf32> to vector<16x32xf32>
    %124 = arith.subf %118, %123 : vector<16x32xf32>
    %125 = arith.mulf %124, %124 : vector<16x32xf32>
    %cst_63 = arith.constant dense<0.000000e+00> : vector<16xf32>
    %126 = vector.multi_reduction <add>, %125, %cst_63 [1] : vector<16x32xf32> to vector<16xf32>
    %127 = vector.shape_cast %126 : vector<16xf32> to vector<16x1xf32>
    %cst_64 = arith.constant 3.200000e+01 : f32
    %128 = vector.broadcast %cst_64 : f32 to vector<16x1xf32>
    %129 = arith.divf %127, %128 : vector<16x1xf32>
    %130 = vector.broadcast %122 : vector<16x1xf32> to vector<16x32xf32>
    %131 = arith.subf %118, %130 : vector<16x32xf32>
    %cst_65 = arith.constant 9.99999974E-6 : f32
    %132 = vector.broadcast %cst_65 : f32 to vector<16x1xf32>
    %133 = arith.addf %129, %132 : vector<16x1xf32>
    %134 = math.rsqrt %133 : vector<16x1xf32>
    %135 = vector.broadcast %134 : vector<16x1xf32> to vector<16x32xf32>
    %136 = arith.mulf %131, %135 : vector<16x32xf32>
    %137 = vector.broadcast %7 : vector<1x32xf32> to vector<16x32xf32>
    %138 = arith.mulf %136, %137 : vector<16x32xf32>
    %139 = vector.broadcast %9 : vector<1x32xf32> to vector<16x32xf32>
    %140 = arith.addf %138, %139 : vector<16x32xf32>
    %c0_66 = arith.constant 0 : index
    %c0_67 = arith.constant 0 : index
    %c0_68 = arith.constant 0 : index
    %141 = vector.load %arg10[%c0_66, %c0_67, %c0_68] : memref<1x32x64xf32, #tpu.memory_space<vmem>>, vector<1x32x64xf32>
    %142 = vector.shape_cast %141 : vector<1x32x64xf32> to vector<32x64xf32>
    %cst_69 = arith.constant dense<0.000000e+00> : vector<16x64xf32>
    %143 = tpu.matmul %140, %142, %cst_69 {dimension_numbers = #tpu.dot_dimension_numbers<[1], [0], [0], [1], [0, 0, 1, 1], [], []>} : vector<16x32xf32>, vector<32x64xf32>, vector<16x64xf32> -> vector<16x64xf32>
    %c0_70 = arith.constant 0 : index
    %c0_71 = arith.constant 0 : index
    %c0_72 = arith.constant 0 : index
    %144 = vector.load %arg11[%c0_70, %c0_71, %c0_72] : memref<1x1x64xf32, #tpu.memory_space<vmem>>, vector<1x1x64xf32>
    %145 = vector.shape_cast %144 : vector<1x1x64xf32> to vector<1x64xf32>
    %146 = vector.broadcast %145 : vector<1x64xf32> to vector<16x64xf32>
    %147 = arith.addf %143, %146 : vector<16x64xf32>
    %cst_73 = arith.constant 0.000000e+00 : f32
    %148 = vector.broadcast %cst_73 : f32 to vector<16x64xf32>
    %149 = arith.maximumf %147, %148 : vector<16x64xf32>
    %c0_74 = arith.constant 0 : index
    %c0_75 = arith.constant 0 : index
    %c0_76 = arith.constant 0 : index
    %150 = vector.load %arg12[%c0_74, %c0_75, %c0_76] : memref<1x64x32xf32, #tpu.memory_space<vmem>>, vector<1x64x32xf32>
    %151 = vector.shape_cast %150 : vector<1x64x32xf32> to vector<64x32xf32>
    %cst_77 = arith.constant dense<0.000000e+00> : vector<16x32xf32>
    %152 = tpu.matmul %149, %151, %cst_77 {dimension_numbers = #tpu.dot_dimension_numbers<[1], [0], [0], [1], [0, 0, 1, 1], [], []>} : vector<16x64xf32>, vector<64x32xf32>, vector<16x32xf32> -> vector<16x32xf32>
    %c0_78 = arith.constant 0 : index
    %c0_79 = arith.constant 0 : index
    %c0_80 = arith.constant 0 : index
    %153 = vector.load %arg13[%c0_78, %c0_79, %c0_80] : memref<1x1x32xf32, #tpu.memory_space<vmem>>, vector<1x1x32xf32>
    %154 = vector.shape_cast %153 : vector<1x1x32xf32> to vector<1x32xf32>
    %155 = vector.broadcast %154 : vector<1x32xf32> to vector<16x32xf32>
    %156 = arith.addf %152, %155 : vector<16x32xf32>
    %157 = arith.addf %140, %156 : vector<16x32xf32>
    %cst_81 = arith.constant dense<0.000000e+00> : vector<16xf32>
    %158 = vector.multi_reduction <add>, %157, %cst_81 [1] : vector<16x32xf32> to vector<16xf32>
    %159 = vector.shape_cast %158 : vector<16xf32> to vector<16x1xf32>
    %cst_82 = arith.constant 3.200000e+01 : f32
    %160 = vector.broadcast %cst_82 : f32 to vector<16x1xf32>
    %161 = arith.divf %159, %160 : vector<16x1xf32>
    %162 = vector.broadcast %161 : vector<16x1xf32> to vector<16x32xf32>
    %163 = arith.subf %157, %162 : vector<16x32xf32>
    %164 = arith.mulf %163, %163 : vector<16x32xf32>
    %cst_83 = arith.constant dense<0.000000e+00> : vector<16xf32>
    %165 = vector.multi_reduction <add>, %164, %cst_83 [1] : vector<16x32xf32> to vector<16xf32>
    %166 = vector.shape_cast %165 : vector<16xf32> to vector<16x1xf32>
    %cst_84 = arith.constant 3.200000e+01 : f32
    %167 = vector.broadcast %cst_84 : f32 to vector<16x1xf32>
    %168 = arith.divf %166, %167 : vector<16x1xf32>
    %169 = vector.broadcast %161 : vector<16x1xf32> to vector<16x32xf32>
    %170 = arith.subf %157, %169 : vector<16x32xf32>
    %cst_85 = arith.constant 9.99999974E-6 : f32
    %171 = vector.broadcast %cst_85 : f32 to vector<16x1xf32>
    %172 = arith.addf %168, %171 : vector<16x1xf32>
    %173 = math.rsqrt %172 : vector<16x1xf32>
    %174 = vector.broadcast %173 : vector<16x1xf32> to vector<16x32xf32>
    %175 = arith.mulf %170, %174 : vector<16x32xf32>
    %176 = vector.broadcast %11 : vector<1x32xf32> to vector<16x32xf32>
    %177 = arith.mulf %175, %176 : vector<16x32xf32>
    %178 = vector.broadcast %13 : vector<1x32xf32> to vector<16x32xf32>
    %179 = arith.addf %177, %178 : vector<16x32xf32>
    %c0_86 = arith.constant 0 : index
    %c0_87 = arith.constant 0 : index
    %180 = vector.load %arg18[%c0_86, %c0_87] : memref<16x32xf32, #tpu.memory_space<vmem>>, vector<16x32xf32>
    tpu.vector_store %arg18[%c0_86, %c0_87], %179 {strides = array<i32>} : memref<16x32xf32, #tpu.memory_space<vmem>>, vector<16x32xf32>,
    return
  }
  func.func @transform_0(%arg0: i32) -> (i32, i32) {
    %c0_i32 = arith.constant 0 : i32
    %c0_i32_0 = arith.constant 0 : i32
    %c0_i32_1 = arith.constant 0 : i32
    return %c0_i32, %c0_i32_0 : i32, i32
  }
  func.func @transform_1(%arg0: i32) -> (i32, i32) {
    %c0_i32 = arith.constant 0 : i32
    %c0_i32_0 = arith.constant 0 : i32
    %c0_i32_1 = arith.constant 0 : i32
    return %c0_i32, %c0_i32_0 : i32, i32
  }
  func.func @transform_2(%arg0: i32) -> (i32, i32) {
    %c0_i32 = arith.constant 0 : i32
    %c0_i32_0 = arith.constant 0 : i32
    %c0_i32_1 = arith.constant 0 : i32
    return %c0_i32, %c0_i32_0 : i32, i32
  }
  func.func @transform_3(%arg0: i32) -> (i32, i32, i32) {
    %c0_i32 = arith.constant 0 : i32
    %c0_i32_0 = arith.constant 0 : i32
    %c0_i32_1 = arith.constant 0 : i32
    return %arg0, %c0_i32, %c0_i32_0 : i32, i32, i32
  }
  func.func @transform_4(%arg0: i32) -> (i32, i32, i32) {
    %c0_i32 = arith.constant 0 : i32
    %c0_i32_0 = arith.constant 0 : i32
    %c0_i32_1 = arith.constant 0 : i32
    return %arg0, %c0_i32, %c0_i32_0 : i32, i32, i32
  }
  func.func @transform_5(%arg0: i32) -> (i32, i32, i32) {
    %c0_i32 = arith.constant 0 : i32
    %c0_i32_0 = arith.constant 0 : i32
    %c0_i32_1 = arith.constant 0 : i32
    return %arg0, %c0_i32, %c0_i32_0 : i32, i32, i32
  }
  func.func @transform_6(%arg0: i32) -> (i32, i32, i32) {
    %c0_i32 = arith.constant 0 : i32
    %c0_i32_0 = arith.constant 0 : i32
    %c0_i32_1 = arith.constant 0 : i32
    return %arg0, %c0_i32, %c0_i32_0 : i32, i32, i32
  }
  func.func @transform_7(%arg0: i32) -> (i32, i32, i32) {
    %c0_i32 = arith.constant 0 : i32
    %c0_i32_0 = arith.constant 0 : i32
    %c0_i32_1 = arith.constant 0 : i32
    return %arg0, %c0_i32, %c0_i32_0 : i32, i32, i32
  }
  func.func @transform_8(%arg0: i32) -> (i32, i32, i32) {
    %c0_i32 = arith.constant 0 : i32
    %c0_i32_0 = arith.constant 0 : i32
    %c0_i32_1 = arith.constant 0 : i32
    return %arg0, %c0_i32, %c0_i32_0 : i32, i32, i32
  }
  func.func @transform_9(%arg0: i32) -> (i32, i32, i32) {
    %c0_i32 = arith.constant 0 : i32
    %c0_i32_0 = arith.constant 0 : i32
    %c0_i32_1 = arith.constant 0 : i32
    return %arg0, %c0_i32, %c0_i32_0 : i32, i32, i32
  }
  func.func @transform_10(%arg0: i32) -> (i32, i32, i32) {
    %c0_i32 = arith.constant 0 : i32
    %c0_i32_0 = arith.constant 0 : i32
    %c0_i32_1 = arith.constant 0 : i32
    return %arg0, %c0_i32, %c0_i32_0 : i32, i32, i32
  }
  func.func @transform_11(%arg0: i32) -> (i32, i32, i32) {
    %c0_i32 = arith.constant 0 : i32
    %c0_i32_0 = arith.constant 0 : i32
    %c0_i32_1 = arith.constant 0 : i32
    return %arg0, %c0_i32, %c0_i32_0 : i32, i32, i32
  }
  func.func @transform_12(%arg0: i32) -> (i32, i32, i32) {
    %c0_i32 = arith.constant 0 : i32
    %c0_i32_0 = arith.constant 0 : i32
    %c0_i32_1 = arith.constant 0 : i32
    return %arg0, %c0_i32, %c0_i32_0 : i32, i32, i32
  }
  func.func @transform_13(%arg0: i32) -> (i32, i32, i32) {
    %c0_i32 = arith.constant 0 : i32
    %c0_i32_0 = arith.constant 0 : i32
    %c0_i32_1 = arith.constant 0 : i32
    return %arg0, %c0_i32, %c0_i32_0 : i32, i32, i32
  }
  func.func @transform_14(%arg0: i32) -> (i32, i32, i32) {
    %c0_i32 = arith.constant 0 : i32
    %c0_i32_0 = arith.constant 0 : i32
    %c0_i32_1 = arith.constant 0 : i32
    return %arg0, %c0_i32, %c0_i32_0 : i32, i32, i32
  }
  func.func @transform_15(%arg0: i32) -> (i32, i32, i32) {
    %c0_i32 = arith.constant 0 : i32
    %c0_i32_0 = arith.constant 0 : i32
    %c0_i32_1 = arith.constant 0 : i32
    return %arg0, %c0_i32, %c0_i32_0 : i32, i32, i32
  }
  func.func @transform_16(%arg0: i32) -> (i32, i32, i32) {
    %c0_i32 = arith.constant 0 : i32
    %c0_i32_0 = arith.constant 0 : i32
    %c0_i32_1 = arith.constant 0 : i32
    return %arg0, %c0_i32, %c0_i32_0 : i32, i32, i32
  }
  func.func @transform_17(%arg0: i32) -> (i32, i32) {
    %c0_i32 = arith.constant 0 : i32
    %c0_i32_0 = arith.constant 0 : i32
    %c0_i32_1 = arith.constant 0 : i32
    return %c0_i32, %c0_i32_0 : i32, i32
  }
}

</mosaic_0001>

<llo_original>
// kernel: act_encoder_forward.1
$region0: #{act_encoder_forward.1}
  #allocation0 [shape = 'u32[]', space=smem, size = 0x4, offset = 0x4, fixed_abs, tag = 'smem constant byte address 0x4 - core index']
  #allocation1 [shape = 'u32[72,128]{1,0:T(1,128)}', space=vmem, size = 0x9000, scoped, tag = 'internal scratch']
  %s0 = inlined_call_operand.vmem [shape: f32[16,32], index: 0, kind: input, shape index: {}]
  %s1 = inlined_call_operand.vmem [shape: f32[16,32], index: 1, kind: input, shape index: {}]
  %s2 = inlined_call_operand.vmem [shape: f32[16,16], index: 2, kind: input, shape index: {}]
  %s3 = inlined_call_operand.vmem [shape: f32[2,32,64], index: 3, kind: input, shape index: {}]
  %s4 = inlined_call_operand.vmem [shape: f32[2,1,64], index: 4, kind: input, shape index: {}]
  %s5 = inlined_call_operand.vmem [shape: f32[2,32,32], index: 5, kind: input, shape index: {}]
  %s6 = inlined_call_operand.vmem [shape: f32[2,1,32], index: 6, kind: input, shape index: {}]
  %s7 = inlined_call_operand.vmem [shape: f32[2,32,32], index: 7, kind: input, shape index: {}]
  %s8 = inlined_call_operand.vmem [shape: f32[2,1,32], index: 8, kind: input, shape index: {}]
  %s9 = inlined_call_operand.vmem [shape: f32[2,32,64], index: 9, kind: input, shape index: {}]
  %s10 = inlined_call_operand.vmem [shape: f32[2,1,64], index: 10, kind: input, shape index: {}]
  %s11 = inlined_call_operand.vmem [shape: f32[2,64,32], index: 11, kind: input, shape index: {}]
  %s12 = inlined_call_operand.vmem [shape: f32[2,1,32], index: 12, kind: input, shape index: {}]
  %s13 = inlined_call_operand.vmem [shape: f32[2,1,32], index: 13, kind: input, shape index: {}]
  %s14 = inlined_call_operand.vmem [shape: f32[2,1,32], index: 14, kind: input, shape index: {}]
  %s15 = inlined_call_operand.vmem [shape: f32[2,1,32], index: 15, kind: input, shape index: {}]
  %s16 = inlined_call_operand.vmem [shape: f32[2,1,32], index: 16, kind: input, shape index: {}]
  %s17 = inlined_call_operand.vmem [shape: f32[16,32], index: 17, kind: output, shape index: {}]
  %s18 = sld [smem:[#allocation0]]
  $region105: #{act_encoder_forward.1} parent=0
    _
  %s20 = ssub.s32 1, %s18
  %s21 = scalar_select 0, %s20, %s18
  loop: start=0, step=1, limit=4
  $region2: #{act_encoder_forward.1} parent=0 // loop_pre_header
    _
  $region3: #{act_encoder_forward.1} parent=0 // loop_header
    %s23 = sphi 0, %s27
    %p24 = scmp.ge.s32.totalorder %s23, 4
    %s31 = sphi 0, %s31
    %s33 = sphi 0, %s31
    %s34 = sphi 0, %s33
    %s48 = sphi 0, %s34
    %s52 = sphi 0, %s52
    %s54 = sphi 0, %s52
    %s55 = sphi 0, %s54
    %s69 = sphi 0, %s55
    %s73 = sphi 0, %s73
    %s75 = sphi 0, %s73
    %s76 = sphi 0, %s75
    %s90 = sphi 0, %s76
    %s96 = sphi 0, %s98
    %s99 = sphi 0, %s96
    %s100 = sphi 0, %s99
    %s116 = sphi 0, %s100
    %s122 = sphi 0, %s124
    %s125 = sphi 0, %s122
    %s126 = sphi 0, %s125
    %s142 = sphi 0, %s126
    %s148 = sphi 0, %s150
    %s151 = sphi 0, %s148
    %s152 = sphi 0, %s151
    %s168 = sphi 0, %s152
    %s174 = sphi 0, %s176
    %s177 = sphi 0, %s174
    %s178 = sphi 0, %s177
    %s194 = sphi 0, %s178
    %s200 = sphi 0, %s202
    %s203 = sphi 0, %s200
    %s204 = sphi 0, %s203
    %s220 = sphi 0, %s204
    %s226 = sphi 0, %s228
    %s229 = sphi 0, %s226
    %s230 = sphi 0, %s229
    %s246 = sphi 0, %s230
    %s252 = sphi 0, %s254
    %s255 = sphi 0, %s252
    %s256 = sphi 0, %s255
    %s272 = sphi 0, %s256
    %s278 = sphi 0, %s280
    %s281 = sphi 0, %s278
    %s282 = sphi 0, %s281
    %s298 = sphi 0, %s282
    %s304 = sphi 0, %s306
    %s307 = sphi 0, %s304
    %s308 = sphi 0, %s307
    %s324 = sphi 0, %s308
    %s330 = sphi 0, %s332
    %s333 = sphi 0, %s330
    %s334 = sphi 0, %s333
    %s350 = sphi 0, %s334
    %s356 = sphi 0, %s358
    %s359 = sphi 0, %s356
    %s360 = sphi 0, %s359
    %s376 = sphi 0, %s360
    %s382 = sphi 0, %s384
    %s385 = sphi 0, %s382
    %s386 = sphi 0, %s385
    %s402 = sphi 0, %s386
    %s408 = sphi 0, %s410
    %s411 = sphi 0, %s408
    %s412 = sphi 0, %s411
    %s428 = sphi 0, %s412
    %s434 = sphi 0, %s436
    %s437 = sphi 0, %s434
    %s438 = sphi 0, %s437
    %s454 = sphi 0, %s438
    %s458 = sphi 0, %s458
    %s460 = sphi 0, %s458
    %s461 = sphi 0, %s460
    %s475 = sphi 0, %s461
  $region4: #{act_encoder_forward.1} parent=0 // loop_header_branch
    %26 = sbr.rel (%p24) target = $region8
  $region5: #{act_encoder_forward.1} parent=0 // loop_body
    %s28 = ssub.s32 %s23, 1
    %s29 = ssub.s32 %s23, 2
    %s30 = sadd.s32 %s23, 1
    %s32 = sadd.s32 %s31, 1
    %p35 = scmp.eq.s32.totalorder %s23, 1
    %p36 = scmp.ne.s32.totalorder %s31, %s33
    %p37 = scmp.eq.s32.totalorder %s23, 0
    %p38 = por %p36, %p37
    %p39 = scmp.ne.s32.totalorder %s31, %s33
    %p40 = scmp.eq.s32.totalorder %s28, 1
    %p41 = por %p39, %p40
    %p42 = scmp.ne.s32.totalorder %s33, %s34
    %p43 = scmp.eq.s32.totalorder %s28, 0
    %p44 = por %p42, %p43
    %p45 = scmp.ne.s32.totalorder %s33, %s34
    %p46 = scmp.eq.s32.totalorder %s29, 1
    %p47 = por %p45, %p46
    %p49 = scmp.ne.s32.totalorder %s34, %s48
    %p50 = scmp.eq.s32.totalorder %s29, 0
    %p51 = por %p49, %p50
    %s53 = sadd.s32 %s52, 1
    %p56 = scmp.eq.s32.totalorder %s23, 1
    %p57 = scmp.ne.s32.totalorder %s52, %s54
    %p58 = scmp.eq.s32.totalorder %s23, 0
    %p59 = por %p57, %p58
    %p60 = scmp.ne.s32.totalorder %s52, %s54
    %p61 = scmp.eq.s32.totalorder %s28, 1
    %p62 = por %p60, %p61
    %p63 = scmp.ne.s32.totalorder %s54, %s55
    %p64 = scmp.eq.s32.totalorder %s28, 0
    %p65 = por %p63, %p64
    %p66 = scmp.ne.s32.totalorder %s54, %s55
    %p67 = scmp.eq.s32.totalorder %s29, 1
    %p68 = por %p66, %p67
    %p70 = scmp.ne.s32.totalorder %s55, %s69
    %p71 = scmp.eq.s32.totalorder %s29, 0
    %p72 = por %p70, %p71
    %s74 = sadd.s32 %s73, 1
    %p77 = scmp.eq.s32.totalorder %s23, 1
    %p78 = scmp.ne.s32.totalorder %s73, %s75
    %p79 = scmp.eq.s32.totalorder %s23, 0
    %p80 = por %p78, %p79
    %p81 = scmp.ne.s32.totalorder %s73, %s75
    %p82 = scmp.eq.s32.totalorder %s28, 1
    %p83 = por %p81, %p82
    %p84 = scmp.ne.s32.totalorder %s75, %s76
    %p85 = scmp.eq.s32.totalorder %s28, 0
    %p86 = por %p84, %p85
    %p87 = scmp.ne.s32.totalorder %s75, %s76
    %p88 = scmp.eq.s32.totalorder %s29, 1
    %p89 = por %p87, %p88
    %p91 = scmp.ne.s32.totalorder %s76, %s90
    %p92 = scmp.eq.s32.totalorder %s29, 0
    %p93 = por %p91, %p92
    %s94 = ssub.s32 %s23, %s30
    %p95 = scmp.eq.s32.totalorder %s94, 0
    %s97 = sadd.s32 %s96, 1
    %s98 = scalar_select %p95, %s96, %s97
    %p101 = pneg %p95
    %p102 = scmp.eq.s32.totalorder %s23, 1
    %p103 = por %p101, %p102
    %p104 = scmp.ne.s32.totalorder %s96, %s99
    %p105 = scmp.eq.s32.totalorder %s23, 0
    %p106 = por %p104, %p105
    %p107 = scmp.ne.s32.totalorder %s96, %s99
    %p108 = scmp.eq.s32.totalorder %s28, 1
    %p109 = por %p107, %p108
    %p110 = scmp.ne.s32.totalorder %s99, %s100
    %p111 = scmp.eq.s32.totalorder %s28, 0
    %p112 = por %p110, %p111
    %p113 = scmp.ne.s32.totalorder %s99, %s100
    %p114 = scmp.eq.s32.totalorder %s29, 1
    %p115 = por %p113, %p114
    %p117 = scmp.ne.s32.totalorder %s100, %s116
    %p118 = scmp.eq.s32.totalorder %s29, 0
    %p119 = por %p117, %p118
    %s120 = ssub.s32 %s23, %s30
    %p121 = scmp.eq.s32.totalorder %s120, 0
    %s123 = sadd.s32 %s122, 1
    %s124 = scalar_select %p121, %s122, %s123
    %p127 = pneg %p121
    %p128 = scmp.eq.s32.totalorder %s23, 1
    %p129 = por %p127, %p128
    %p130 = scmp.ne.s32.totalorder %s122, %s125
    %p131 = scmp.eq.s32.totalorder %s23, 0
    %p132 = por %p130, %p131
    %p133 = scmp.ne.s32.totalorder %s122, %s125
    %p134 = scmp.eq.s32.totalorder %s28, 1
    %p135 = por %p133, %p134
    %p136 = scmp.ne.s32.totalorder %s125, %s126
    %p137 = scmp.eq.s32.totalorder %s28, 0
    %p138 = por %p136, %p137
    %p139 = scmp.ne.s32.totalorder %s125, %s126
    %p140 = scmp.eq.s32.totalorder %s29, 1
    %p141 = por %p139, %p140
    %p143 = scmp.ne.s32.totalorder %s126, %s142
    %p144 = scmp.eq.s32.totalorder %s29, 0
    %p145 = por %p143, %p144
    %s146 = ssub.s32 %s23, %s30
    %p147 = scmp.eq.s32.totalorder %s146, 0
    %s149 = sadd.s32 %s148, 1
    %s150 = scalar_select %p147, %s148, %s149
    %p153 = pneg %p147
    %p154 = scmp.eq.s32.totalorder %s23, 1
    %p155 = por %p153, %p154
    %p156 = scmp.ne.s32.totalorder %s148, %s151
    %p157 = scmp.eq.s32.totalorder %s23, 0
    %p158 = por %p156, %p157
    %p159 = scmp.ne.s32.totalorder %s148, %s151
    %p160 = scmp.eq.s32.totalorder %s28, 1
    %p161 = por %p159, %p160
    %p162 = scmp.ne.s32.totalorder %s151, %s152
    %p163 = scmp.eq.s32.totalorder %s28, 0
    %p164 = por %p162, %p163
    %p165 = scmp.ne.s32.totalorder %s151, %s152
    %p166 = scmp.eq.s32.totalorder %s29, 1
    %p167 = por %p165, %p166
    %p169 = scmp.ne.s32.totalorder %s152, %s168
    %p170 = scmp.eq.s32.totalorder %s29, 0
    %p171 = por %p169, %p170
    %s172 = ssub.s32 %s23, %s30
    %p173 = scmp.eq.s32.totalorder %s172, 0
    %s175 = sadd.s32 %s174, 1
    %s176 = scalar_select %p173, %s174, %s175
    %p179 = pneg %p173
    %p180 = scmp.eq.s32.totalorder %s23, 1
    %p181 = por %p179, %p180
    %p182 = scmp.ne.s32.totalorder %s174, %s177
    %p183 = scmp.eq.s32.totalorder %s23, 0
    %p184 = por %p182, %p183
    %p185 = scmp.ne.s32.totalorder %s174, %s177
    %p186 = scmp.eq.s32.totalorder %s28, 1
    %p187 = por %p185, %p186
    %p188 = scmp.ne.s32.totalorder %s177, %s178
    %p189 = scmp.eq.s32.totalorder %s28, 0
    %p190 = por %p188, %p189
    %p191 = scmp.ne.s32.totalorder %s177, %s178
    %p192 = scmp.eq.s32.totalorder %s29, 1
    %p193 = por %p191, %p192
    %p195 = scmp.ne.s32.totalorder %s178, %s194
    %p196 = scmp.eq.s32.totalorder %s29, 0
    %p197 = por %p195, %p196
    %s198 = ssub.s32 %s23, %s30
    %p199 = scmp.eq.s32.totalorder %s198, 0
    %s201 = sadd.s32 %s200, 1
    %s202 = scalar_select %p199, %s200, %s201
    %p205 = pneg %p199
    %p206 = scmp.eq.s32.totalorder %s23, 1
    %p207 = por %p205, %p206
    %p208 = scmp.ne.s32.totalorder %s200, %s203
    %p209 = scmp.eq.s32.totalorder %s23, 0
    %p210 = por %p208, %p209
    %p211 = scmp.ne.s32.totalorder %s200, %s203
    %p212 = scmp.eq.s32.totalorder %s28, 1
    %p213 = por %p211, %p212
    %p214 = scmp.ne.s32.totalorder %s203, %s204
    %p215 = scmp.eq.s32.totalorder %s28, 0
    %p216 = por %p214, %p215
    %p217 = scmp.ne.s32.totalorder %s203, %s204
    %p218 = scmp.eq.s32.totalorder %s29, 1
    %p219 = por %p217, %p218
    %p221 = scmp.ne.s32.totalorder %s204, %s220
    %p222 = scmp.eq.s32.totalorder %s29, 0
    %p223 = por %p221, %p222
    %s224 = ssub.s32 %s23, %s30
    %p225 = scmp.eq.s32.totalorder %s224, 0
    %s227 = sadd.s32 %s226, 1
    %s228 = scalar_select %p225, %s226, %s227
    %p231 = pneg %p225
    %p232 = scmp.eq.s32.totalorder %s23, 1
    %p233 = por %p231, %p232
    %p234 = scmp.ne.s32.totalorder %s226, %s229
    %p235 = scmp.eq.s32.totalorder %s23, 0
    %p236 = por %p234, %p235
    %p237 = scmp.ne.s32.totalorder %s226, %s229
    %p238 = scmp.eq.s32.totalorder %s28, 1
    %p239 = por %p237, %p238
    %p240 = scmp.ne.s32.totalorder %s229, %s230
    %p241 = scmp.eq.s32.totalorder %s28, 0
    %p242 = por %p240, %p241
    %p243 = scmp.ne.s32.totalorder %s229, %s230
    %p244 = scmp.eq.s32.totalorder %s29, 1
    %p245 = por %p243, %p244
    %p247 = scmp.ne.s32.totalorder %s230, %s246
    %p248 = scmp.eq.s32.totalorder %s29, 0
    %p249 = por %p247, %p248
    %s250 = ssub.s32 %s23, %s30
    %p251 = scmp.eq.s32.totalorder %s250, 0
    %s253 = sadd.s32 %s252, 1
    %s254 = scalar_select %p251, %s252, %s253
    %p257 = pneg %p251
    %p258 = scmp.eq.s32.totalorder %s23, 1
    %p259 = por %p257, %p258
    %p260 = scmp.ne.s32.totalorder %s252, %s255
    %p261 = scmp.eq.s32.totalorder %s23, 0
    %p262 = por %p260, %p261
    %p263 = scmp.ne.s32.totalorder %s252, %s255
    %p264 = scmp.eq.s32.totalorder %s28, 1
    %p265 = por %p263, %p264
    %p266 = scmp.ne.s32.totalorder %s255, %s256
    %p267 = scmp.eq.s32.totalorder %s28, 0
    %p268 = por %p266, %p267
    %p269 = scmp.ne.s32.totalorder %s255, %s256
    %p270 = scmp.eq.s32.totalorder %s29, 1
    %p271 = por %p269, %p270
    %p273 = scmp.ne.s32.totalorder %s256, %s272
    %p274 = scmp.eq.s32.totalorder %s29, 0
    %p275 = por %p273, %p274
    %s276 = ssub.s32 %s23, %s30
    %p277 = scmp.eq.s32.totalorder %s276, 0
    %s279 = sadd.s32 %s278, 1
    %s280 = scalar_select %p277, %s278, %s279
    %p283 = pneg %p277
    %p284 = scmp.eq.s32.totalorder %s23, 1
    %p285 = por %p283, %p284
    %p286 = scmp.ne.s32.totalorder %s278, %s281
    %p287 = scmp.eq.s32.totalorder %s23, 0
    %p288 = por %p286, %p287
    %p289 = scmp.ne.s32.totalorder %s278, %s281
    %p290 = scmp.eq.s32.totalorder %s28, 1
    %p291 = por %p289, %p290
    %p292 = scmp.ne.s32.totalorder %s281, %s282
    %p293 = scmp.eq.s32.totalorder %s28, 0
    %p294 = por %p292, %p293
    %p295 = scmp.ne.s32.totalorder %s281, %s282
    %p296 = scmp.eq.s32.totalorder %s29, 1
    %p297 = por %p295, %p296
    %p299 = scmp.ne.s32.totalorder %s282, %s298
    %p300 = scmp.eq.s32.totalorder %s29, 0
    %p301 = por %p299, %p300
    %s302 = ssub.s32 %s23, %s30
    %p303 = scmp.eq.s32.totalorder %s302, 0
    %s305 = sadd.s32 %s304, 1
    %s306 = scalar_select %p303, %s304, %s305
    %p309 = pneg %p303
    %p310 = scmp.eq.s32.totalorder %s23, 1
    %p311 = por %p309, %p310
    %p312 = scmp.ne.s32.totalorder %s304, %s307
    %p313 = scmp.eq.s32.totalorder %s23, 0
    %p314 = por %p312, %p313
    %p315 = scmp.ne.s32.totalorder %s304, %s307
    %p316 = scmp.eq.s32.totalorder %s28, 1
    %p317 = por %p315, %p316
    %p318 = scmp.ne.s32.totalorder %s307, %s308
    %p319 = scmp.eq.s32.totalorder %s28, 0
    %p320 = por %p318, %p319
    %p321 = scmp.ne.s32.totalorder %s307, %s308
    %p322 = scmp.eq.s32.totalorder %s29, 1
    %p323 = por %p321, %p322
    %p325 = scmp.ne.s32.totalorder %s308, %s324
    %p326 = scmp.eq.s32.totalorder %s29, 0
    %p327 = por %p325, %p326
    %s328 = ssub.s32 %s23, %s30
    %p329 = scmp.eq.s32.totalorder %s328, 0
    %s331 = sadd.s32 %s330, 1
    %s332 = scalar_select %p329, %s330, %s331
    %p335 = pneg %p329
    %p336 = scmp.eq.s32.totalorder %s23, 1
    %p337 = por %p335, %p336
    %p338 = scmp.ne.s32.totalorder %s330, %s333
    %p339 = scmp.eq.s32.totalorder %s23, 0
    %p340 = por %p338, %p339
    %p341 = scmp.ne.s32.totalorder %s330, %s333
    %p342 = scmp.eq.s32.totalorder %s28, 1
    %p343 = por %p341, %p342
    %p344 = scmp.ne.s32.totalorder %s333, %s334
    %p345 = scmp.eq.s32.totalorder %s28, 0
    %p346 = por %p344, %p345
    %p347 = scmp.ne.s32.totalorder %s333, %s334
    %p348 = scmp.eq.s32.totalorder %s29, 1
    %p349 = por %p347, %p348
    %p351 = scmp.ne.s32.totalorder %s334, %s350
    %p352 = scmp.eq.s32.totalorder %s29, 0
    %p353 = por %p351, %p352
    %s354 = ssub.s32 %s23, %s30
    %p355 = scmp.eq.s32.totalorder %s354, 0
    %s357 = sadd.s32 %s356, 1
    %s358 = scalar_select %p355, %s356, %s357
    %p361 = pneg %p355
    %p362 = scmp.eq.s32.totalorder %s23, 1
    %p363 = por %p361, %p362
    %p364 = scmp.ne.s32.totalorder %s356, %s359
    %p365 = scmp.eq.s32.totalorder %s23, 0
    %p366 = por %p364, %p365
    %p367 = scmp.ne.s32.totalorder %s356, %s359
    %p368 = scmp.eq.s32.totalorder %s28, 1
    %p369 = por %p367, %p368
    %p370 = scmp.ne.s32.totalorder %s359, %s360
    %p371 = scmp.eq.s32.totalorder %s28, 0
    %p372 = por %p370, %p371
    %p373 = scmp.ne.s32.totalorder %s359, %s360
    %p374 = scmp.eq.s32.totalorder %s29, 1
    %p375 = por %p373, %p374
    %p377 = scmp.ne.s32.totalorder %s360, %s376
    %p378 = scmp.eq.s32.totalorder %s29, 0
    %p379 = por %p377, %p378
    %s380 = ssub.s32 %s23, %s30
    %p381 = scmp.eq.s32.totalorder %s380, 0
    %s383 = sadd.s32 %s382, 1
    %s384 = scalar_select %p381, %s382, %s383
    %p387 = pneg %p381
    %p388 = scmp.eq.s32.totalorder %s23, 1
    %p389 = por %p387, %p388
    %p390 = scmp.ne.s32.totalorder %s382, %s385
    %p391 = scmp.eq.s32.totalorder %s23, 0
    %p392 = por %p390, %p391
    %p393 = scmp.ne.s32.totalorder %s382, %s385
    %p394 = scmp.eq.s32.totalorder %s28, 1
    %p395 = por %p393, %p394
    %p396 = scmp.ne.s32.totalorder %s385, %s386
    %p397 = scmp.eq.s32.totalorder %s28, 0
    %p398 = por %p396, %p397
    %p399 = scmp.ne.s32.totalorder %s385, %s386
    %p400 = scmp.eq.s32.totalorder %s29, 1
    %p401 = por %p399, %p400
    %p403 = scmp.ne.s32.totalorder %s386, %s402
    %p404 = scmp.eq.s32.totalorder %s29, 0
    %p405 = por %p403, %p404
    %s406 = ssub.s32 %s23, %s30
    %p407 = scmp.eq.s32.totalorder %s406, 0
    %s409 = sadd.s32 %s408, 1
    %s410 = scalar_select %p407, %s408, %s409
    %p413 = pneg %p407
    %p414 = scmp.eq.s32.totalorder %s23, 1
    %p415 = por %p413, %p414
    %p416 = scmp.ne.s32.totalorder %s408, %s411
    %p417 = scmp.eq.s32.totalorder %s23, 0
    %p418 = por %p416, %p417
    %p419 = scmp.ne.s32.totalorder %s408, %s411
    %p420 = scmp.eq.s32.totalorder %s28, 1
    %p421 = por %p419, %p420
    %p422 = scmp.ne.s32.totalorder %s411, %s412
    %p423 = scmp.eq.s32.totalorder %s28, 0
    %p424 = por %p422, %p423
    %p425 = scmp.ne.s32.totalorder %s411, %s412
    %p426 = scmp.eq.s32.totalorder %s29, 1
    %p427 = por %p425, %p426
    %p429 = scmp.ne.s32.totalorder %s412, %s428
    %p430 = scmp.eq.s32.totalorder %s29, 0
    %p431 = por %p429, %p430
    %s432 = ssub.s32 %s23, %s30
    %p433 = scmp.eq.s32.totalorder %s432, 0
    %s435 = sadd.s32 %s434, 1
    %s436 = scalar_select %p433, %s434, %s435
    %p439 = pneg %p433
    %p440 = scmp.eq.s32.totalorder %s23, 1
    %p441 = por %p439, %p440
    %p442 = scmp.ne.s32.totalorder %s434, %s437
    %p443 = scmp.eq.s32.totalorder %s23, 0
    %p444 = por %p442, %p443
    %p445 = scmp.ne.s32.totalorder %s434, %s437
    %p446 = scmp.eq.s32.totalorder %s28, 1
    %p447 = por %p445, %p446
    %p448 = scmp.ne.s32.totalorder %s437, %s438
    %p449 = scmp.eq.s32.totalorder %s28, 0
    %p450 = por %p448, %p449
    %p451 = scmp.ne.s32.totalorder %s437, %s438
    %p452 = scmp.eq.s32.totalorder %s29, 1
    %p453 = por %p451, %p452
    %p455 = scmp.ne.s32.totalorder %s438, %s454
    %p456 = scmp.eq.s32.totalorder %s29, 0
    %p457 = por %p455, %p456
    %s459 = sadd.s32 %s458, 1
    %p462 = scmp.eq.s32.totalorder %s23, 1
    %p463 = scmp.ne.s32.totalorder %s458, %s460
    %p464 = scmp.eq.s32.totalorder %s23, 0
    %p465 = por %p463, %p464
    %p466 = scmp.ne.s32.totalorder %s458, %s460
    %p467 = scmp.eq.s32.totalorder %s28, 1
    %p468 = por %p466, %p467
    %p469 = scmp.ne.s32.totalorder %s460, %s461
    %p470 = scmp.eq.s32.totalorder %s28, 0
    %p471 = por %p469, %p470
    %p472 = scmp.ne.s32.totalorder %s460, %s461
    %p473 = scmp.eq.s32.totalorder %s29, 1
    %p474 = por %p472, %p473
    %p476 = scmp.ne.s32.totalorder %s461, %s475
    %p477 = scmp.eq.s32.totalorder %s29, 0
    %p478 = por %p476, %p477
    %p479 = scmp.le.s32.totalorder 1, %s23
    %p480 = scmp.lt.s32.totalorder %s23, 3
    %p481 = pnand %p479, %p480
    %p482 = pneg %p481
    // Predicated region
    $region9: #{act_encoder_forward.1} parent=5 // pred_check
      _
    $region10: #{act_encoder_forward.1} parent=5 // pred_check_branch
      %484 = sbr.rel (%p481) target = $region12
    $region11: #{act_encoder_forward.1} parent=5 // pred_region
      %s485 = ssub.s32 %s23, 1
      // Predicated region
      $region13: #{act_encoder_forward.1} parent=11 // pred_check
        %p486 = pneg %p44
      $region14: #{act_encoder_forward.1} parent=11 // pred_check_branch
        %488 = sbr.rel (%p486) target = $region16
      $region15: #{act_encoder_forward.1} parent=11 // pred_region
        _
      $region16: #{act_encoder_forward.1} parent=11 // pred_fallthru
        _
      // Predicated region
      $region17: #{act_encoder_forward.1} parent=11 // pred_check
        %p489 = pneg %p65
      $region18: #{act_encoder_forward.1} parent=11 // pred_check_branch
        %491 = sbr.rel (%p489) target = $region20
      $region19: #{act_encoder_forward.1} parent=11 // pred_region
        _
      $region20: #{act_encoder_forward.1} parent=11 // pred_fallthru
        _
      // Predicated region
      $region21: #{act_encoder_forward.1} parent=11 // pred_check
        %p492 = pneg %p86
      $region22: #{act_encoder_forward.1} parent=11 // pred_check_branch
        %494 = sbr.rel (%p492) target = $region24
      $region23: #{act_encoder_forward.1} parent=11 // pred_region
        _
      $region24: #{act_encoder_forward.1} parent=11 // pred_fallthru
        _
    $region12: #{act_encoder_forward.1} parent=5 // pred_fallthru
      _
    %p495 = scmp.lt.s32.totalorder %s23, 2
    // Predicated region
    $region25: #{act_encoder_forward.1} parent=5 // pred_check
      %p496 = pneg %p495
    $region26: #{act_encoder_forward.1} parent=5 // pred_check_branch
      %498 = sbr.rel (%p496) target = $region28
    $region27: #{act_encoder_forward.1} parent=5 // pred_region
      // Predicated region
      $region29: #{act_encoder_forward.1} parent=27 // pred_check
        %p499 = pneg %p106
      $region30: #{act_encoder_forward.1} parent=27 // pred_check_branch
        %501 = sbr.rel (%p499) target = $region32
      $region31: #{act_encoder_forward.1} parent=27 // pred_region
        %p502 = scmp.lt.s32.totalorder %s23, 1
        %s503 = scalar_select %p502, %s23, 1
        %s504 = smul.addr %s503, 4
        %s505 = smul.addr %s504, 8
        %s506 = scalar_lea.vmem %s3, %s505
      $region32: #{act_encoder_forward.1} parent=27 // pred_fallthru
        _
      // Predicated region
      $region33: #{act_encoder_forward.1} parent=27 // pred_check
        %p507 = pneg %p132
      $region34: #{act_encoder_forward.1} parent=27 // pred_check_branch
        %509 = sbr.rel (%p507) target = $region36
      $region35: #{act_encoder_forward.1} parent=27 // pred_region
        %p510 = scmp.lt.s32.totalorder %s23, 1
        %s511 = scalar_select %p510, %s23, 1
        %s512 = scalar_lea.vmem %s4, %s511
      $region36: #{act_encoder_forward.1} parent=27 // pred_fallthru
        _
      // Predicated region
      $region37: #{act_encoder_forward.1} parent=27 // pred_check
        %p513 = pneg %p158
      $region38: #{act_encoder_forward.1} parent=27 // pred_check_branch
        %515 = sbr.rel (%p513) target = $region40
      $region39: #{act_encoder_forward.1} parent=27 // pred_region
        %p516 = scmp.lt.s32.totalorder %s23, 1
        %s517 = scalar_select %p516, %s23, 1
        %s518 = smul.addr %s517, 4
        %s519 = smul.addr %s518, 8
        %s520 = scalar_lea.vmem %s5, %s519
      $region40: #{act_encoder_forward.1} parent=27 // pred_fallthru
        _
      // Predicated region
      $region41: #{act_encoder_forward.1} parent=27 // pred_check
        %p521 = pneg %p184
      $region42: #{act_encoder_forward.1} parent=27 // pred_check_branch
        %523 = sbr.rel (%p521) target = $region44
      $region43: #{act_encoder_forward.1} parent=27 // pred_region
        %p524 = scmp.lt.s32.totalorder %s23, 1
        %s525 = scalar_select %p524, %s23, 1
        %s526 = scalar_lea.vmem %s6, %s525
      $region44: #{act_encoder_forward.1} parent=27 // pred_fallthru
        _
      // Predicated region
      $region45: #{act_encoder_forward.1} parent=27 // pred_check
        %p527 = pneg %p210
      $region46: #{act_encoder_forward.1} parent=27 // pred_check_branch
        %529 = sbr.rel (%p527) target = $region48
      $region47: #{act_encoder_forward.1} parent=27 // pred_region
        %p530 = scmp.lt.s32.totalorder %s23, 1
        %s531 = scalar_select %p530, %s23, 1
        %s532 = smul.addr %s531, 4
        %s533 = smul.addr %s532, 8
        %s534 = scalar_lea.vmem %s7, %s533
      $region48: #{act_encoder_forward.1} parent=27 // pred_fallthru
        _
      // Predicated region
      $region49: #{act_encoder_forward.1} parent=27 // pred_check
        %p535 = pneg %p236
      $region50: #{act_encoder_forward.1} parent=27 // pred_check_branch
        %537 = sbr.rel (%p535) target = $region52
      $region51: #{act_encoder_forward.1} parent=27 // pred_region
        %p538 = scmp.lt.s32.totalorder %s23, 1
        %s539 = scalar_select %p538, %s23, 1
        %s540 = scalar_lea.vmem %s8, %s539
      $region52: #{act_encoder_forward.1} parent=27 // pred_fallthru
        _
      // Predicated region
      $region53: #{act_encoder_forward.1} parent=27 // pred_check
        %p541 = pneg %p262
      $region54: #{act_encoder_forward.1} parent=27 // pred_check_branch
        %543 = sbr.rel (%p541) target = $region56
      $region55: #{act_encoder_forward.1} parent=27 // pred_region
        %p544 = scmp.lt.s32.totalorder %s23, 1
        %s545 = scalar_select %p544, %s23, 1
        %s546 = smul.addr %s545, 4
        %s547 = smul.addr %s546, 8
        %s548 = scalar_lea.vmem %s9, %s547
      $region56: #{act_encoder_forward.1} parent=27 // pred_fallthru
        _
      // Predicated region
      $region57: #{act_encoder_forward.1} parent=27 // pred_check
        %p549 = pneg %p288
      $region58: #{act_encoder_forward.1} parent=27 // pred_check_branch
        %551 = sbr.rel (%p549) target = $region60
      $region59: #{act_encoder_forward.1} parent=27 // pred_region
        %p552 = scmp.lt.s32.totalorder %s23, 1
        %s553 = scalar_select %p552, %s23, 1
        %s554 = scalar_lea.vmem %s10, %s553
      $region60: #{act_encoder_forward.1} parent=27 // pred_fallthru
        _
      // Predicated region
      $region61: #{act_encoder_forward.1} parent=27 // pred_check
        %p555 = pneg %p314
      $region62: #{act_encoder_forward.1} parent=27 // pred_check_branch
        %557 = sbr.rel (%p555) target = $region64
      $region63: #{act_encoder_forward.1} parent=27 // pred_region
        %p558 = scmp.lt.s32.totalorder %s23, 1
        %s559 = scalar_select %p558, %s23, 1
        %s560 = smul.addr %s559, 8
        %s561 = smul.addr %s560, 8
        %s562 = scalar_lea.vmem %s11, %s561
      $region64: #{act_encoder_forward.1} parent=27 // pred_fallthru
        _
      // Predicated region
      $region65: #{act_encoder_forward.1} parent=27 // pred_check
        %p563 = pneg %p340
      $region66: #{act_encoder_forward.1} parent=27 // pred_check_branch
        %565 = sbr.rel (%p563) target = $region68
      $region67: #{act_encoder_forward.1} parent=27 // pred_region
        %p566 = scmp.lt.s32.totalorder %s23, 1
        %s567 = scalar_select %p566, %s23, 1
        %s568 = scalar_lea.vmem %s12, %s567
      $region68: #{act_encoder_forward.1} parent=27 // pred_fallthru
        _
      // Predicated region
      $region69: #{act_encoder_forward.1} parent=27 // pred_check
        %p569 = pneg %p366
      $region70: #{act_encoder_forward.1} parent=27 // pred_check_branch
        %571 = sbr.rel (%p569) target = $region72
      $region71: #{act_encoder_forward.1} parent=27 // pred_region
        %p572 = scmp.lt.s32.totalorder %s23, 1
        %s573 = scalar_select %p572, %s23, 1
        %s574 = scalar_lea.vmem %s13, %s573
      $region72: #{act_encoder_forward.1} parent=27 // pred_fallthru
        _
      // Predicated region
      $region73: #{act_encoder_forward.1} parent=27 // pred_check
        %p575 = pneg %p392
      $region74: #{act_encoder_forward.1} parent=27 // pred_check_branch
        %577 = sbr.rel (%p575) target = $region76
      $region75: #{act_encoder_forward.1} parent=27 // pred_region
        %p578 = scmp.lt.s32.totalorder %s23, 1
        %s579 = scalar_select %p578, %s23, 1
        %s580 = scalar_lea.vmem %s14, %s579
      $region76: #{act_encoder_forward.1} parent=27 // pred_fallthru
        _
      // Predicated region
      $region77: #{act_encoder_forward.1} parent=27 // pred_check
        %p581 = pneg %p418
      $region78: #{act_encoder_forward.1} parent=27 // pred_check_branch
        %583 = sbr.rel (%p581) target = $region80
      $region79: #{act_encoder_forward.1} parent=27 // pred_region
        %p584 = scmp.lt.s32.totalorder %s23, 1
        %s585 = scalar_select %p584, %s23, 1
        %s586 = scalar_lea.vmem %s15, %s585
      $region80: #{act_encoder_forward.1} parent=27 // pred_fallthru
        _
      // Predicated region
      $region81: #{act_encoder_forward.1} parent=27 // pred_check
        %p587 = pneg %p444
      $region82: #{act_encoder_forward.1} parent=27 // pred_check_branch
        %589 = sbr.rel (%p587) target = $region84
      $region83: #{act_encoder_forward.1} parent=27 // pred_region
        %p590 = scmp.lt.s32.totalorder %s23, 1
        %s591 = scalar_select %p590, %s23, 1
        %s592 = scalar_lea.vmem %s16, %s591
      $region84: #{act_encoder_forward.1} parent=27 // pred_fallthru
        _
    $region28: #{act_encoder_forward.1} parent=5 // pred_fallthru
      _
    %p593 = scmp.le.s32.totalorder 1, %s23
    %p594 = scmp.lt.s32.totalorder %s23, 3
    %p595 = pnand %p593, %p594
    %p596 = pneg %p595
    // Predicated region
    $region85: #{act_encoder_forward.1} parent=5 // pred_check
      _
    $region86: #{act_encoder_forward.1} parent=5 // pred_check_branch
      %598 = sbr.rel (%p595) target = $region88
    $region87: #{act_encoder_forward.1} parent=5 // pred_region
      %s599 = ssub.s32 %s23, 1
      %p600 = pneg %p44
      %p601 = pneg %p41
      %p602 = pneg %p65
      %p603 = pneg %p62
      %p604 = pneg %p86
      %p605 = pneg %p83
      %p606 = scmp.lt.s32.totalorder %s28, 1
      %s607 = scalar_select %p606, %s28, 1
      %s608 = smul.addr %s607, 4
      %s609 = smul.addr %s608, 8
      %s610 = scalar_lea.vmem %s3, %s609
      %p611 = pneg %p112
      %p612 = pneg %p109
      %p613 = scmp.lt.s32.totalorder %s28, 1
      %s614 = scalar_select %p613, %s28, 1
      %s615 = scalar_lea.vmem %s4, %s614
      %p616 = pneg %p138
      %p617 = pneg %p135
      %p618 = scmp.lt.s32.totalorder %s28, 1
      %s619 = scalar_select %p618, %s28, 1
      %s620 = smul.addr %s619, 4
      %s621 = smul.addr %s620, 8
      %s622 = scalar_lea.vmem %s5, %s621
      %p623 = pneg %p164
      %p624 = pneg %p161
      %p625 = scmp.lt.s32.totalorder %s28, 1
      %s626 = scalar_select %p625, %s28, 1
      %s627 = scalar_lea.vmem %s6, %s626
      %p628 = pneg %p190
      %p629 = pneg %p187
      %p630 = scmp.lt.s32.totalorder %s28, 1
      %s631 = scalar_select %p630, %s28, 1
      %s632 = smul.addr %s631, 4
      %s633 = smul.addr %s632, 8
      %s634 = scalar_lea.vmem %s7, %s633
      %p635 = pneg %p216
      %p636 = pneg %p213
      %p637 = scmp.lt.s32.totalorder %s28, 1
      %s638 = scalar_select %p637, %s28, 1
      %s639 = scalar_lea.vmem %s8, %s638
      %p640 = pneg %p242
      %p641 = pneg %p239
      %p642 = scmp.lt.s32.totalorder %s28, 1
      %s643 = scalar_select %p642, %s28, 1
      %s644 = smul.addr %s643, 4
      %s645 = smul.addr %s644, 8
      %s646 = scalar_lea.vmem %s9, %s645
      %p647 = pneg %p268
      %p648 = pneg %p265
      %p649 = scmp.lt.s32.totalorder %s28, 1
      %s650 = scalar_select %p649, %s28, 1
      %s651 = scalar_lea.vmem %s10, %s650
      %p652 = pneg %p294
      %p653 = pneg %p291
      %p654 = scmp.lt.s32.totalorder %s28, 1
      %s655 = scalar_select %p654, %s28, 1
      %s656 = smul.addr %s655, 8
      %s657 = smul.addr %s656, 8
      %s658 = scalar_lea.vmem %s11, %s657
      %p659 = pneg %p320
      %p660 = pneg %p317
      %p661 = scmp.lt.s32.totalorder %s28, 1
      %s662 = scalar_select %p661, %s28, 1
      %s663 = scalar_lea.vmem %s12, %s662
      %p664 = pneg %p346
      %p665 = pneg %p343
      %p666 = scmp.lt.s32.totalorder %s28, 1
      %s667 = scalar_select %p666, %s28, 1
      %s668 = scalar_lea.vmem %s13, %s667
      %p669 = pneg %p372
      %p670 = pneg %p369
      %p671 = scmp.lt.s32.totalorder %s28, 1
      %s672 = scalar_select %p671, %s28, 1
      %s673 = scalar_lea.vmem %s14, %s672
      %p674 = pneg %p398
      %p675 = pneg %p395
      %p676 = scmp.lt.s32.totalorder %s28, 1
      %s677 = scalar_select %p676, %s28, 1
      %s678 = scalar_lea.vmem %s15, %s677
      %p679 = pneg %p424
      %p680 = pneg %p421
      %p681 = scmp.lt.s32.totalorder %s28, 1
      %s682 = scalar_select %p681, %s28, 1
      %s683 = scalar_lea.vmem %s16, %s682
      %p684 = pneg %p450
      %p685 = pneg %p447
      %p686 = pneg %p471
      %p687 = pneg %p468
      %p688 = scmp.lt.s32.totalorder %s28, 1
      %s689 = scalar_select %p688, %s28, 1
      %s690 = smul.addr %s689, 4
      %s691 = smul.addr %s690, 8
      %s692 = scalar_lea.vmem %s3, %s691
      %p693 = scmp.lt.s32.totalorder %s28, 1
      %s694 = scalar_select %p693, %s28, 1
      %s695 = scalar_lea.vmem %s4, %s694
      %p696 = scmp.lt.s32.totalorder %s28, 1
      %s697 = scalar_select %p696, %s28, 1
      %s698 = smul.addr %s697, 4
      %s699 = smul.addr %s698, 8
      %s700 = scalar_lea.vmem %s5, %s699
      %p701 = scmp.lt.s32.totalorder %s28, 1
      %s702 = scalar_select %p701, %s28, 1
      %s703 = scalar_lea.vmem %s6, %s702
      %p704 = scmp.lt.s32.totalorder %s28, 1
      %s705 = scalar_select %p704, %s28, 1
      %s706 = smul.addr %s705, 4
      %s707 = smul.addr %s706, 8
      %s708 = scalar_lea.vmem %s7, %s707
      %p709 = scmp.lt.s32.totalorder %s28, 1
      %s710 = scalar_select %p709, %s28, 1
      %s711 = scalar_lea.vmem %s8, %s710
      %p712 = scmp.lt.s32.totalorder %s28, 1
      %s713 = scalar_select %p712, %s28, 1
      %s714 = smul.addr %s713, 4
      %s715 = smul.addr %s714, 8
      %s716 = scalar_lea.vmem %s9, %s715
      %p717 = scmp.lt.s32.totalorder %s28, 1
      %s718 = scalar_select %p717, %s28, 1
      %s719 = scalar_lea.vmem %s10, %s718
      %p720 = scmp.lt.s32.totalorder %s28, 1
      %s721 = scalar_select %p720, %s28, 1
      %s722 = smul.addr %s721, 8
      %s723 = smul.addr %s722, 8
      %s724 = scalar_lea.vmem %s11, %s723
      %p725 = scmp.lt.s32.totalorder %s28, 1
      %s726 = scalar_select %p725, %s28, 1
      %s727 = scalar_lea.vmem %s12, %s726
      %p728 = scmp.lt.s32.totalorder %s28, 1
      %s729 = scalar_select %p728, %s28, 1
      %s730 = scalar_lea.vmem %s13, %s729
      %p731 = scmp.lt.s32.totalorder %s28, 1
      %s732 = scalar_select %p731, %s28, 1
      %s733 = scalar_lea.vmem %s14, %s732
      %p734 = scmp.lt.s32.totalorder %s28, 1
      %s735 = scalar_select %p734, %s28, 1
      %s736 = scalar_lea.vmem %s15, %s735
      %p737 = scmp.lt.s32.totalorder %s28, 1
      %s738 = scalar_select %p737, %s28, 1
      %s739 = scalar_lea.vmem %s16, %s738
      %p740 = scmp.eq.s32.totalorder %s28, 0
      // Predicated region
      $region89: #{act_encoder_forward.1} parent=87 // pred_check
        %p741 = pneg %p740
      $region90: #{act_encoder_forward.1} parent=87 // pred_check_branch
        %743 = sbr.rel (%p741) target = $region92
      $region91: #{act_encoder_forward.1} parent=87 // pred_region
        %v744 = vld [vmem:[%s0] sm:$0xff]
        %v745 = vld [vmem:[%s0 + $0x8] sm:$0xff]
        %vm746 = vcmask 261120
        %747 = vst.msk [vmem:[%s17] sm:$0xff] %vm746, %v744
        %748 = vst.msk [vmem:[%s17 + $0x8] sm:$0xff] %vm746, %v745
      $region92: #{act_encoder_forward.1} parent=87 // pred_fallthru
        _
      %v749 = vld [vmem:[%s17] sm:$0xff]
      %v750 = vld [vmem:[%s17 + $0x8] sm:$0xff]
      %v751 = vld [vmem:[%s1] sm:$0xff]
      %v752 = vld [vmem:[%s1 + $0x8] sm:$0xff]
      %v753 = vld [vmem:[%s2] sm:$0xff]
      %v754 = vld [vmem:[%s2 + $0x8] sm:$0xff]
      %v755 = vld [vmem:[%s730] sm:$0x1]
      %v756 = vld [vmem:[%s733] sm:$0x1]
      %v757 = vld [vmem:[%s736] sm:$0x1]
      %v758 = vld [vmem:[%s739] sm:$0x1]
      %v759 = vadd.f32 %v749, %v751
      %v760 = vadd.f32 %v750, %v752
      %v761 = vld [vmem:[%s692] sm:$0xff]
      %v762 = vld [vmem:[%s692 + $0x8] sm:$0xff]
      %v763 = vld [vmem:[%s692 + $0x10] sm:$0xff]
      %v764 = vld [vmem:[%s692 + $0x18] sm:$0xff]
      %v765 = vld [vmem:[%s695] sm:$0x1]
      %v767 = vperm.slane %v765, 0
      %vm769 = vcmask 261120
      %v771 = vsel %vm769, %v759, 0
      %v774 = vsel %vm769, %v760, 0
      %776 = vmatpush.msra.mxu0 0.0
      %777 = vmatpush.msra.mxu0 0.0
      %778 = vmatpush.msra.mxu0 0.0
      %779 = vmatpush.msra.mxu0 0.0
      %780 = vmatpush.msra.mxu0 0.0
      %781 = vmatpush.msra.mxu0 0.0
      %782 = vmatpush.msra.mxu0 0.0
      %783 = vmatpush.msra.mxu0 0.0
      %784 = vmatpush.msra.mxu0 0.0
      %785 = vmatpush.msra.mxu0 0.0
      %786 = vmatpush.msra.mxu0 0.0
      %787 = vmatpush.msra.mxu0 0.0
      %788 = vmatpush.msra.mxu0 %v764
      %789 = vmatpush.msra.mxu0 %v763
      %790 = vmatpush.msra.mxu0 %v762
      %791 = vmatpush.msra.mxu0 %v761
      %792 = vmatmul.f32.gmra.mxu0 %v771
      %v793 = vpop.f32.mrf.mxu0
      %v794 = vadd.f32 %v767, %v793
      %795 = vmatmul.f32.gmra.mxu0 %v774
      %v796 = vpop.f32.mrf.mxu0
      %v797 = vadd.f32 %v767, %v796
      %798 = vdwg.mxu0
      %v799 = vld [vmem:[%s700] sm:$0xff]
      %v800 = vld [vmem:[%s700 + $0x8] sm:$0xff]
      %v801 = vld [vmem:[%s700 + $0x10] sm:$0xff]
      %v802 = vld [vmem:[%s700 + $0x18] sm:$0xff]
      %v803 = vld [vmem:[%s703] sm:$0x1]
      %v805 = vperm.slane %v803, 0
      %v808 = vsel %vm769, %v749, 0
      %v811 = vsel %vm769, %v750, 0
      %813 = vmatpush.msra.mxu0 0.0
      %814 = vmatpush.msra.mxu0 0.0
      %815 = vmatpush.msra.mxu0 0.0
      %816 = vmatpush.msra.mxu0 0.0
      %817 = vmatpush.msra.mxu0 0.0
      %818 = vmatpush.msra.mxu0 0.0
      %819 = vmatpush.msra.mxu0 0.0
      %820 = vmatpush.msra.mxu0 0.0
      %821 = vmatpush.msra.mxu0 0.0
      %822 = vmatpush.msra.mxu0 0.0
      %823 = vmatpush.msra.mxu0 0.0
      %824 = vmatpush.msra.mxu0 0.0
      %825 = vmatpush.msra.mxu0 %v802
      %826 = vmatpush.msra.mxu0 %v801
      %827 = vmatpush.msra.mxu0 %v800
      %828 = vmatpush.msra.mxu0 %v799
      %829 = vmatmul.f32.gmra.mxu0 %v808
      %v830 = vpop.f32.mrf.mxu0
      %v831 = vadd.f32 %v805, %v830
      %832 = vmatmul.f32.gmra.mxu0 %v811
      %v833 = vpop.f32.mrf.mxu0
      %v834 = vadd.f32 %v805, %v833
      %835 = vdwg.mxu0
      %v836 = vld [vmem:[%s708] sm:$0xff]
      %v837 = vld [vmem:[%s708 + $0x8] sm:$0xff]
      %v838 = vld [vmem:[%s708 + $0x10] sm:$0xff]
      %v839 = vld [vmem:[%s708 + $0x18] sm:$0xff]
      %v840 = vmul.f32 %v794, 0.35355338
      %v841 = vmul.f32 %v797, 0.35355338
      %844 = vrot.lane.b32.xlu0 %v794, 96
      %v845 = vpop.permute.xlu0 %844
      %846 = vrot.lane.b32.xlu0 %v797, 96
      %v847 = vpop.permute.xlu0 %846
      %vm848 = vcmask 64512
      %v850 = vsel %vm848, %v840, 0
      %v853 = vsel %vm848, %v841, 0
      %v855 = vsel %vm848, %v845, 0
      %v857 = vsel %vm848, %v847, 0
      %859 = vmatpush.xpose.msra.mxu0 0.0
      %860 = vmatpush.xpose.msra.mxu0 0.0
      %861 = vmatpush.xpose.msra.mxu0 0.0
      %862 = vmatpush.xpose.msra.mxu0 0.0
      %863 = vmatpush.xpose.msra.mxu0 0.0
      %864 = vmatpush.xpose.msra.mxu0 0.0
      %865 = vmatpush.xpose.msra.mxu0 0.0
      %866 = vmatpush.xpose.msra.mxu0 0.0
      %867 = vmatpush.xpose.msra.mxu0 0.0
      %868 = vmatpush.xpose.msra.mxu0 0.0
      %869 = vmatpush.xpose.msra.mxu0 0.0
      %870 = vmatpush.xpose.msra.mxu0 0.0
      %871 = vmatpush.xpose.msra.mxu0 0.0
      %872 = vmatpush.xpose.msra.mxu0 0.0
      %873 = vmatpush.xpose.msra.mxu0 %v857
      %874 = vmatpush.xpose.msra.mxu0 %v855
      %875 = vmatmul.f32.gmra.mxu0 %v850
      %v876 = vpop.f32.mrf.mxu0
      %v877 = vadd.f32 %v753, %v876
      %878 = vmatmul.f32.gmra.mxu0 %v853
      %v879 = vpop.f32.mrf.mxu0
      %v880 = vadd.f32 %v754, %v879
      %881 = vdwg.mxu0
      %vm882 = vcmask 130048
      %v883 = vsel %vm882, %v877, -inf
      %884 = vmax.xlane.f32.xlu0 %v883
      %v885 = vpop.xlane.xlu0 %884
      %v886 = vsel %vm882, %v880, -inf
      %887 = vmax.xlane.f32.xlu0 %v886
      %v888 = vpop.xlane.xlu0 %887
      %v889 = vsub.f32 %v877, %v885
      %v890 = vsub.f32 %v880, %v888
      %v891 = vmul.f32 %v889, 1.442695
      %v892 = vpow.pop %v891
      %v893 = vmul.f32 %v890, 1.442695
      %v894 = vpow.pop %v893
      %v895 = vsel %vm882, %v892, 0.0
      %896 = vadd.xlane.f32.xlu0 %v895
      %v897 = vpop.xlane.xlu0 %896
      %v898 = vsel %vm882, %v894, 0.0
      %899 = vadd.xlane.f32.xlu0 %v898
      %v900 = vpop.xlane.xlu0 %899
      %v901 = vrcp.pop %v897
      %v902 = vrcp.pop %v900
      %v903 = vmul.f32 %v892, %v901
      %v904 = vmul.f32 %v894, %v902
      %v906 = vsel %vm882, %v903, 0
      %v909 = vsel %vm882, %v904, 0
      %911 = vmatpush.msra.mxu0 0.0
      %912 = vmatpush.msra.mxu0 0.0
      %913 = vmatpush.msra.mxu0 0.0
      %914 = vmatpush.msra.mxu0 0.0
      %915 = vmatpush.msra.mxu0 0.0
      %916 = vmatpush.msra.mxu0 0.0
      %917 = vmatpush.msra.mxu0 0.0
      %918 = vmatpush.msra.mxu0 0.0
      %919 = vmatpush.msra.mxu0 0.0
      %920 = vmatpush.msra.mxu0 0.0
      %921 = vmatpush.msra.mxu0 0.0
      %922 = vmatpush.msra.mxu0 0.0
      %923 = vmatpush.msra.mxu0 0.0
      %924 = vmatpush.msra.mxu0 0.0
      %925 = vmatpush.msra.mxu0 %v834
      %926 = vmatpush.msra.mxu0 %v831
      %927 = vmatmul.f32.gmra.mxu0 %v906
      %v928 = vpop.f32.mrf.mxu0
      %v929 = vadd.f32 0.0, %v928
      %930 = vmatmul.f32.gmra.mxu0 %v909
      %v931 = vpop.f32.mrf.mxu0
      %v932 = vadd.f32 0.0, %v931
      %933 = vdwg.mxu0
      %934 = vrot.lane.b32.xlu0 %v840, 120
      %v935 = vpop.permute.xlu0 %934
      %936 = vrot.lane.b32.xlu0 %v841, 120
      %v937 = vpop.permute.xlu0 %936
      %938 = vrot.lane.b32.xlu0 %v794, 88
      %v939 = vpop.permute.xlu0 %938
      %940 = vrot.lane.b32.xlu0 %v797, 88
      %v941 = vpop.permute.xlu0 %940
      %v942 = vsel %vm848, %v935, 0
      %v944 = vsel %vm848, %v937, 0
      %v946 = vsel %vm848, %v939, 0
      %v948 = vsel %vm848, %v941, 0
      %950 = vmatpush.xpose.msra.mxu0 0.0
      %951 = vmatpush.xpose.msra.mxu0 0.0
      %952 = vmatpush.xpose.msra.mxu0 0.0
      %953 = vmatpush.xpose.msra.mxu0 0.0
      %954 = vmatpush.xpose.msra.mxu0 0.0
      %955 = vmatpush.xpose.msra.mxu0 0.0
      %956 = vmatpush.xpose.msra.mxu0 0.0
      %957 = vmatpush.xpose.msra.mxu0 0.0
      %958 = vmatpush.xpose.msra.mxu0 0.0
      %959 = vmatpush.xpose.msra.mxu0 0.0
      %960 = vmatpush.xpose.msra.mxu0 0.0
      %961 = vmatpush.xpose.msra.mxu0 0.0
      %962 = vmatpush.xpose.msra.mxu0 0.0
      %963 = vmatpush.xpose.msra.mxu0 0.0
      %964 = vmatpush.xpose.msra.mxu0 %v948
      %965 = vmatpush.xpose.msra.mxu0 %v946
      %966 = vmatmul.f32.gmra.mxu0 %v942
      %v967 = vpop.f32.mrf.mxu0
      %v968 = vadd.f32 %v753, %v967
      %969 = vmatmul.f32.gmra.mxu0 %v944
      %v970 = vpop.f32.mrf.mxu0
      %v971 = vadd.f32 %v754, %v970
      %972 = vdwg.mxu0
      %v973 = vsel %vm882, %v968, -inf
      %974 = vmax.xlane.f32.xlu0 %v973
      %v975 = vpop.xlane.xlu0 %974
      %v976 = vsel %vm882, %v971, -inf
      %977 = vmax.xlane.f32.xlu0 %v976
      %v978 = vpop.xlane.xlu0 %977
      %v979 = vsub.f32 %v968, %v975
      %v980 = vsub.f32 %v971, %v978
      %v981 = vmul.f32 %v979, 1.442695
      %v982 = vpow.pop %v981
      %v983 = vmul.f32 %v980, 1.442695
      %v984 = vpow.pop %v983
      %v985 = vsel %vm882, %v982, 0.0
      %986 = vadd.xlane.f32.xlu0 %v985
      %v987 = vpop.xlane.xlu0 %986
      %v988 = vsel %vm882, %v984, 0.0
      %989 = vadd.xlane.f32.xlu0 %v988
      %v990 = vpop.xlane.xlu0 %989
      %v991 = vrcp.pop %v987
      %v992 = vrcp.pop %v990
      %v993 = vmul.f32 %v982, %v991
      %v994 = vmul.f32 %v984, %v992
      %997 = vrot.lane.b32.xlu0 %v831, 120
      %v998 = vpop.permute.xlu0 %997
      %999 = vrot.lane.b32.xlu0 %v834, 120
      %v1000 = vpop.permute.xlu0 %999
      %v1004 = vsel %vm882, %v993, 0
      %v1007 = vsel %vm882, %v994, 0
      %1009 = vmatpush.msra.mxu0 0.0
      %1010 = vmatpush.msra.mxu0 0.0
      %1011 = vmatpush.msra.mxu0 0.0
      %1012 = vmatpush.msra.mxu0 0.0
      %1013 = vmatpush.msra.mxu0 0.0
      %1014 = vmatpush.msra.mxu0 0.0
      %1015 = vmatpush.msra.mxu0 0.0
      %1016 = vmatpush.msra.mxu0 0.0
      %1017 = vmatpush.msra.mxu0 0.0
      %1018 = vmatpush.msra.mxu0 0.0
      %1019 = vmatpush.msra.mxu0 0.0
      %1020 = vmatpush.msra.mxu0 0.0
      %1021 = vmatpush.msra.mxu0 0.0
      %1022 = vmatpush.msra.mxu0 0.0
      %1023 = vmatpush.msra.mxu0 %v1000
      %1024 = vmatpush.msra.mxu0 %v998
      %1025 = vmatmul.f32.gmra.mxu0 %v1004
      %v1026 = vpop.f32.mrf.mxu0
      %v1027 = vadd.f32 0.0, %v1026
      %1028 = vmatmul.f32.gmra.mxu0 %v1007
      %v1029 = vpop.f32.mrf.mxu0
      %v1030 = vadd.f32 0.0, %v1029
      %1031 = vdwg.mxu0
      %v1033 = vsel %vm848, %v1027, 0
      %v1036 = vsel %vm848, %v1030, 0
      %1038 = vmatpush.msra.mxu0 0.0
      %1039 = vmatpush.msra.mxu0 0.0
      %1040 = vmatpush.msra.mxu0 0.0
      %1041 = vmatpush.msra.mxu0 0.0
      %1042 = vmatpush.msra.mxu0 0.0
      %1043 = vmatpush.msra.mxu0 0.0
      %1044 = vmatpush.msra.mxu0 0.0
      %1045 = vmatpush.msra.mxu0 0.0
      %1046 = vmatpush.msra.mxu0 0.0
      %1047 = vmatpush.msra.mxu0 0.0
      %1048 = vmatpush.msra.mxu0 0.0
      %1049 = vmatpush.msra.mxu0 0.0
      %1050 = vmatpush.msra.mxu0 0.0
      %1051 = vmatpush.msra.mxu0 0.0
      %1052 = vmatpush.msra.mxu0 0.0
      %1053 = vmatpush.msra.mxu0 %v837
      %1054 = vmatmul.f32.gmra.mxu0 %v1033
      %v1055 = vpop.f32.mrf.mxu0
      %v1056 = vadd.f32 0.0, %v1055
      %1057 = vmatmul.f32.gmra.mxu0 %v1036
      %v1058 = vpop.f32.mrf.mxu0
      %v1059 = vadd.f32 0.0, %v1058
      %1060 = vdwg.mxu0
      %v1062 = vsel %vm848, %v929, 0
      %v1065 = vsel %vm848, %v932, 0
      %1067 = vmatpush.msra.mxu0 0.0
      %1068 = vmatpush.msra.mxu0 0.0
      %1069 = vmatpush.msra.mxu0 0.0
      %1070 = vmatpush.msra.mxu0 0.0
      %1071 = vmatpush.msra.mxu0 0.0
      %1072 = vmatpush.msra.mxu0 0.0
      %1073 = vmatpush.msra.mxu0 0.0
      %1074 = vmatpush.msra.mxu0 0.0
      %1075 = vmatpush.msra.mxu0 0.0
      %1076 = vmatpush.msra.mxu0 0.0
      %1077 = vmatpush.msra.mxu0 0.0
      %1078 = vmatpush.msra.mxu0 0.0
      %1079 = vmatpush.msra.mxu0 0.0
      %1080 = vmatpush.msra.mxu0 0.0
      %1081 = vmatpush.msra.mxu0 0.0
      %1082 = vmatpush.msra.mxu0 %v836
      %1083 = vmatmul.f32.gmra.mxu0 %v1062
      %v1084 = vpop.f32.mrf.mxu0
      %v1085 = vadd.f32 %v1056, %v1084
      %1086 = vmatmul.f32.gmra.mxu0 %v1065
      %v1087 = vpop.f32.mrf.mxu0
      %v1088 = vadd.f32 %v1059, %v1087
      %1089 = vdwg.mxu0
      %1090 = vrot.lane.b32.xlu0 %v840, 112
      %v1091 = vpop.permute.xlu0 %1090
      %1092 = vrot.lane.b32.xlu0 %v841, 112
      %v1093 = vpop.permute.xlu0 %1092
      %1094 = vrot.lane.b32.xlu0 %v794, 80
      %v1095 = vpop.permute.xlu0 %1094
      %1096 = vrot.lane.b32.xlu0 %v797, 80
      %v1097 = vpop.permute.xlu0 %1096
      %v1098 = vsel %vm848, %v1091, 0
      %v1100 = vsel %vm848, %v1093, 0
      %v1102 = vsel %vm848, %v1095, 0
      %v1104 = vsel %vm848, %v1097, 0
      %1106 = vmatpush.xpose.msra.mxu0 0.0
      %1107 = vmatpush.xpose.msra.mxu0 0.0
      %1108 = vmatpush.xpose.msra.mxu0 0.0
      %1109 = vmatpush.xpose.msra.mxu0 0.0
      %1110 = vmatpush.xpose.msra.mxu0 0.0
      %1111 = vmatpush.xpose.msra.mxu0 0.0
      %1112 = vmatpush.xpose.msra.mxu0 0.0
      %1113 = vmatpush.xpose.msra.mxu0 0.0
      %1114 = vmatpush.xpose.msra.mxu0 0.0
      %1115 = vmatpush.xpose.msra.mxu0 0.0
      %1116 = vmatpush.xpose.msra.mxu0 0.0
      %1117 = vmatpush.xpose.msra.mxu0 0.0
      %1118 = vmatpush.xpose.msra.mxu0 0.0
      %1119 = vmatpush.xpose.msra.mxu0 0.0
      %1120 = vmatpush.xpose.msra.mxu0 %v1104
      %1121 = vmatpush.xpose.msra.mxu0 %v1102
      %1122 = vmatmul.f32.gmra.mxu0 %v1098
      %v1123 = vpop.f32.mrf.mxu0
      %v1124 = vadd.f32 %v753, %v1123
      %1125 = vmatmul.f32.gmra.mxu0 %v1100
      %v1126 = vpop.f32.mrf.mxu0
      %v1127 = vadd.f32 %v754, %v1126
      %1128 = vdwg.mxu0
      %v1129 = vsel %vm882, %v1124, -inf
      %1130 = vmax.xlane.f32.xlu0 %v1129
      %v1131 = vpop.xlane.xlu0 %1130
      %v1132 = vsel %vm882, %v1127, -inf
      %1133 = vmax.xlane.f32.xlu0 %v1132
      %v1134 = vpop.xlane.xlu0 %1133
      %v1135 = vsub.f32 %v1124, %v1131
      %v1136 = vsub.f32 %v1127, %v1134
      %v1137 = vmul.f32 %v1135, 1.442695
      %v1138 = vpow.pop %v1137
      %v1139 = vmul.f32 %v1136, 1.442695
      %v1140 = vpow.pop %v1139
      %v1141 = vsel %vm882, %v1138, 0.0
      %1142 = vadd.xlane.f32.xlu0 %v1141
      %v1143 = vpop.xlane.xlu0 %1142
      %v1144 = vsel %vm882, %v1140, 0.0
      %1145 = vadd.xlane.f32.xlu0 %v1144
      %v1146 = vpop.xlane.xlu0 %1145
      %v1147 = vrcp.pop %v1143
      %v1148 = vrcp.pop %v1146
      %v1149 = vmul.f32 %v1138, %v1147
      %v1150 = vmul.f32 %v1140, %v1148
      %1151 = vrot.lane.b32.xlu0 %v831, 112
      %v1152 = vpop.permute.xlu0 %1151
      %1153 = vrot.lane.b32.xlu0 %v834, 112
      %v1154 = vpop.permute.xlu0 %1153
      %v1158 = vsel %vm882, %v1149, 0
      %v1161 = vsel %vm882, %v1150, 0
      %1163 = vmatpush.msra.mxu0 0.0
      %1164 = vmatpush.msra.mxu0 0.0
      %1165 = vmatpush.msra.mxu0 0.0
      %1166 = vmatpush.msra.mxu0 0.0
      %1167 = vmatpush.msra.mxu0 0.0
      %1168 = vmatpush.msra.mxu0 0.0
      %1169 = vmatpush.msra.mxu0 0.0
      %1170 = vmatpush.msra.mxu0 0.0
      %1171 = vmatpush.msra.mxu0 0.0
      %1172 = vmatpush.msra.mxu0 0.0
      %1173 = vmatpush.msra.mxu0 0.0
      %1174 = vmatpush.msra.mxu0 0.0
      %1175 = vmatpush.msra.mxu0 0.0
      %1176 = vmatpush.msra.mxu0 0.0
      %1177 = vmatpush.msra.mxu0 %v1154
      %1178 = vmatpush.msra.mxu0 %v1152
      %1179 = vmatmul.f32.gmra.mxu0 %v1158
      %v1180 = vpop.f32.mrf.mxu0
      %v1181 = vadd.f32 0.0, %v1180
      %1182 = vmatmul.f32.gmra.mxu0 %v1161
      %v1183 = vpop.f32.mrf.mxu0
      %v1184 = vadd.f32 0.0, %v1183
      %1185 = vdwg.mxu0
      %v1187 = vsel %vm848, %v1181, 0
      %v1190 = vsel %vm848, %v1184, 0
      %1192 = vmatpush.msra.mxu0 0.0
      %1193 = vmatpush.msra.mxu0 0.0
      %1194 = vmatpush.msra.mxu0 0.0
      %1195 = vmatpush.msra.mxu0 0.0
      %1196 = vmatpush.msra.mxu0 0.0
      %1197 = vmatpush.msra.mxu0 0.0
      %1198 = vmatpush.msra.mxu0 0.0
      %1199 = vmatpush.msra.mxu0 0.0
      %1200 = vmatpush.msra.mxu0 0.0
      %1201 = vmatpush.msra.mxu0 0.0
      %1202 = vmatpush.msra.mxu0 0.0
      %1203 = vmatpush.msra.mxu0 0.0
      %1204 = vmatpush.msra.mxu0 0.0
      %1205 = vmatpush.msra.mxu0 0.0
      %1206 = vmatpush.msra.mxu0 0.0
      %1207 = vmatpush.msra.mxu0 %v838
      %1208 = vmatmul.f32.gmra.mxu0 %v1187
      %v1209 = vpop.f32.mrf.mxu0
      %v1210 = vadd.f32 0.0, %v1209
      %1211 = vmatmul.f32.gmra.mxu0 %v1190
      %v1212 = vpop.f32.mrf.mxu0
      %v1213 = vadd.f32 0.0, %v1212
      %1214 = vdwg.mxu0
      %v1215 = vadd.f32 %v1085, %v1210
      %v1216 = vadd.f32 %v1088, %v1213
      %1217 = vrot.lane.b32.xlu0 %v840, 104
      %v1218 = vpop.permute.xlu0 %1217
      %1219 = vrot.lane.b32.xlu0 %v841, 104
      %v1220 = vpop.permute.xlu0 %1219
      %1221 = vrot.lane.b32.xlu0 %v794, 72
      %v1222 = vpop.permute.xlu0 %1221
      %1223 = vrot.lane.b32.xlu0 %v797, 72
      %v1224 = vpop.permute.xlu0 %1223
      %v1225 = vsel %vm848, %v1218, 0
      %v1227 = vsel %vm848, %v1220, 0
      %v1229 = vsel %vm848, %v1222, 0
      %v1231 = vsel %vm848, %v1224, 0
      %1233 = vmatpush.xpose.msra.mxu0 0.0
      %1234 = vmatpush.xpose.msra.mxu0 0.0
      %1235 = vmatpush.xpose.msra.mxu0 0.0
      %1236 = vmatpush.xpose.msra.mxu0 0.0
      %1237 = vmatpush.xpose.msra.mxu0 0.0
      %1238 = vmatpush.xpose.msra.mxu0 0.0
      %1239 = vmatpush.xpose.msra.mxu0 0.0
      %1240 = vmatpush.xpose.msra.mxu0 0.0
      %1241 = vmatpush.xpose.msra.mxu0 0.0
      %1242 = vmatpush.xpose.msra.mxu0 0.0
      %1243 = vmatpush.xpose.msra.mxu0 0.0
      %1244 = vmatpush.xpose.msra.mxu0 0.0
      %1245 = vmatpush.xpose.msra.mxu0 0.0
      %1246 = vmatpush.xpose.msra.mxu0 0.0
      %1247 = vmatpush.xpose.msra.mxu0 %v1231
      %1248 = vmatpush.xpose.msra.mxu0 %v1229
      %1249 = vmatmul.f32.gmra.mxu0 %v1225
      %v1250 = vpop.f32.mrf.mxu0
      %v1251 = vadd.f32 %v753, %v1250
      %1252 = vmatmul.f32.gmra.mxu0 %v1227
      %v1253 = vpop.f32.mrf.mxu0
      %v1254 = vadd.f32 %v754, %v1253
      %1255 = vdwg.mxu0
      %v1256 = vsel %vm882, %v1251, -inf
      %1257 = vmax.xlane.f32.xlu0 %v1256
      %v1258 = vpop.xlane.xlu0 %1257
      %v1259 = vsel %vm882, %v1254, -inf
      %1260 = vmax.xlane.f32.xlu0 %v1259
      %v1261 = vpop.xlane.xlu0 %1260
      %v1262 = vsub.f32 %v1251, %v1258
      %v1263 = vsub.f32 %v1254, %v1261
      %v1264 = vmul.f32 %v1262, 1.442695
      %v1265 = vpow.pop %v1264
      %v1266 = vmul.f32 %v1263, 1.442695
      %v1267 = vpow.pop %v1266
      %v1268 = vsel %vm882, %v1265, 0.0
      %1269 = vadd.xlane.f32.xlu0 %v1268
      %v1270 = vpop.xlane.xlu0 %1269
      %v1271 = vsel %vm882, %v1267, 0.0
      %1272 = vadd.xlane.f32.xlu0 %v1271
      %v1273 = vpop.xlane.xlu0 %1272
      %v1274 = vrcp.pop %v1270
      %v1275 = vrcp.pop %v1273
      %v1276 = vmul.f32 %v1265, %v1274
      %v1277 = vmul.f32 %v1267, %v1275
      %1278 = vrot.lane.b32.xlu0 %v831, 104
      %v1279 = vpop.permute.xlu0 %1278
      %1280 = vrot.lane.b32.xlu0 %v834, 104
      %v1281 = vpop.permute.xlu0 %1280
      %v1285 = vsel %vm882, %v1276, 0
      %v1288 = vsel %vm882, %v1277, 0
      %1290 = vmatpush.msra.mxu0 0.0
      %1291 = vmatpush.msra.mxu0 0.0
      %1292 = vmatpush.msra.mxu0 0.0
      %1293 = vmatpush.msra.mxu0 0.0
      %1294 = vmatpush.msra.mxu0 0.0
      %1295 = vmatpush.msra.mxu0 0.0
      %1296 = vmatpush.msra.mxu0 0.0
      %1297 = vmatpush.msra.mxu0 0.0
      %1298 = vmatpush.msra.mxu0 0.0
      %1299 = vmatpush.msra.mxu0 0.0
      %1300 = vmatpush.msra.mxu0 0.0
      %1301 = vmatpush.msra.mxu0 0.0
      %1302 = vmatpush.msra.mxu0 0.0
      %1303 = vmatpush.msra.mxu0 0.0
      %1304 = vmatpush.msra.mxu0 %v1281
      %1305 = vmatpush.msra.mxu0 %v1279
      %1306 = vmatmul.f32.gmra.mxu0 %v1285
      %v1307 = vpop.f32.mrf.mxu0
      %v1308 = vadd.f32 0.0, %v1307
      %1309 = vmatmul.f32.gmra.mxu0 %v1288
      %v1310 = vpop.f32.mrf.mxu0
      %v1311 = vadd.f32 0.0, %v1310
      %1312 = vdwg.mxu0
      %v1314 = vsel %vm848, %v1308, 0
      %v1317 = vsel %vm848, %v1311, 0
      %1319 = vmatpush.msra.mxu0 0.0
      %1320 = vmatpush.msra.mxu0 0.0
      %1321 = vmatpush.msra.mxu0 0.0
      %1322 = vmatpush.msra.mxu0 0.0
      %1323 = vmatpush.msra.mxu0 0.0
      %1324 = vmatpush.msra.mxu0 0.0
      %1325 = vmatpush.msra.mxu0 0.0
      %1326 = vmatpush.msra.mxu0 0.0
      %1327 = vmatpush.msra.mxu0 0.0
      %1328 = vmatpush.msra.mxu0 0.0
      %1329 = vmatpush.msra.mxu0 0.0
      %1330 = vmatpush.msra.mxu0 0.0
      %1331 = vmatpush.msra.mxu0 0.0
      %1332 = vmatpush.msra.mxu0 0.0
      %1333 = vmatpush.msra.mxu0 0.0
      %1334 = vmatpush.msra.mxu0 %v839
      %1335 = vmatmul.f32.gmra.mxu0 %v1314
      %v1336 = vpop.f32.mrf.mxu0
      %v1337 = vadd.f32 0.0, %v1336
      %1338 = vmatmul.f32.gmra.mxu0 %v1317
      %v1339 = vpop.f32.mrf.mxu0
      %v1340 = vadd.f32 0.0, %v1339
      %1341 = vdwg.mxu0
      %v1342 = vadd.f32 %v1215, %v1337
      %v1343 = vadd.f32 %v1216, %v1340
      %v1344 = vld [vmem:[%s711] sm:$0x1]
      %v1346 = vperm.slane %v1344, 0
      %v1348 = vadd.f32 %v1342, %v1346
      %v1349 = vadd.f32 %v1343, %v1346
      %v1350 = vadd.f32 %v749, %v1348
      %v1351 = vadd.f32 %v750, %v1349
      %v1352 = vsel %vm769, %v1350, 0.0
      %1353 = vadd.xlane.f32.xlu0 %v1352
      %v1354 = vpop.xlane.xlu0 %1353
      %v1355 = vsel %vm769, %v1351, 0.0
      %1356 = vadd.xlane.f32.xlu0 %v1355
      %v1357 = vpop.xlane.xlu0 %1356
      %v1358 = vrcp.pop 32.0
      %v1359 = vmul.f32 32.0, %v1358
      %v1360 = vsub.f32 1.0, %v1359
      %v1361 = vmul.f32 %v1358, %v1360
      %v1362 = vadd.f32 %v1358, %v1361
      %vm1363 = vweird.f32 %v1358
      %v1364 = vsel %vm1363, %v1358, %v1362
      %v1365 = vmul.f32 %v1354, %v1364
      %v1366 = vmul.f32 %v1357, %v1364
      %v1367 = vsub.f32 %v1350, %v1365
      %v1368 = vsub.f32 %v1351, %v1366
      %v1369 = vmul.f32 %v1367, %v1367
      %v1370 = vmul.f32 %v1368, %v1368
      %v1371 = vsel %vm769, %v1369, 0.0
      %1372 = vadd.xlane.f32.xlu0 %v1371
      %v1373 = vpop.xlane.xlu0 %1372
      %v1374 = vsel %vm769, %v1370, 0.0
      %1375 = vadd.xlane.f32.xlu0 %v1374
      %v1376 = vpop.xlane.xlu0 %1375
      %v1377 = vmul.f32 %v1373, %v1364
      %v1378 = vmul.f32 %v1376, %v1364
      %v1379 = vadd.f32 %v1377, 1e-05
      %v1380 = vadd.f32 %v1378, 1e-05
      %v1381 = vrsqrt.pop %v1379
      %v1382 = vmul.f32 %v1381, %v1379
      %v1383 = vmul.f32 %v1382, %v1381
      %v1384 = vmul.f32 0.5, %v1383
      %v1385 = vsub.f32 1.5, %v1384
      %v1386 = vmul.f32 %v1381, %v1385
      %vm1387 = vweird.f32 %v1379
      %vm1388 = vweird.f32 %v1381
      %vm1389 = vmor %vm1387, %vm1388
      %v1390 = vsel %vm1389, %v1381, %v1386
      %v1391 = vrsqrt.pop %v1380
      %v1392 = vmul.f32 %v1391, %v1380
      %v1393 = vmul.f32 %v1392, %v1391
      %v1394 = vmul.f32 0.5, %v1393
      %v1395 = vsub.f32 1.5, %v1394
      %v1396 = vmul.f32 %v1391, %v1395
      %vm1397 = vweird.f32 %v1380
      %vm1398 = vweird.f32 %v1391
      %vm1399 = vmor %vm1397, %vm1398
      %v1400 = vsel %vm1399, %v1391, %v1396
      %v1401 = vmul.f32 %v1367, %v1390
      %v1402 = vmul.f32 %v1368, %v1400
      %v1404 = vperm.slane %v755, 0
      %v1406 = vmul.f32 %v1401, %v1404
      %v1407 = vmul.f32 %v1402, %v1404
      %v1409 = vperm.slane %v756, 0
      %v1411 = vadd.f32 %v1406, %v1409
      %v1412 = vadd.f32 %v1407, %v1409
      %v1413 = vld [vmem:[%s716] sm:$0xff]
      %v1414 = vld [vmem:[%s716 + $0x8] sm:$0xff]
      %v1415 = vld [vmem:[%s716 + $0x10] sm:$0xff]
      %v1416 = vld [vmem:[%s716 + $0x18] sm:$0xff]
      %v1417 = vld [vmem:[%s719] sm:$0x1]
      %v1419 = vperm.slane %v1417, 0
      %v1422 = vsel %vm769, %v1411, 0
      %v1425 = vsel %vm769, %v1412, 0
      %1427 = vmatpush.msra.mxu0 0.0
      %1428 = vmatpush.msra.mxu0 0.0
      %1429 = vmatpush.msra.mxu0 0.0
      %1430 = vmatpush.msra.mxu0 0.0
      %1431 = vmatpush.msra.mxu0 0.0
      %1432 = vmatpush.msra.mxu0 0.0
      %1433 = vmatpush.msra.mxu0 0.0
      %1434 = vmatpush.msra.mxu0 0.0
      %1435 = vmatpush.msra.mxu0 0.0
      %1436 = vmatpush.msra.mxu0 0.0
      %1437 = vmatpush.msra.mxu0 0.0
      %1438 = vmatpush.msra.mxu0 0.0
      %1439 = vmatpush.msra.mxu0 %v1416
      %1440 = vmatpush.msra.mxu0 %v1415
      %1441 = vmatpush.msra.mxu0 %v1414
      %1442 = vmatpush.msra.mxu0 %v1413
      %1443 = vmatmul.f32.gmra.mxu0 %v1422
      %v1444 = vpop.f32.mrf.mxu0
      %v1445 = vadd.f32 %v1419, %v1444
      %1446 = vmatmul.f32.gmra.mxu0 %v1425
      %v1447 = vpop.f32.mrf.mxu0
      %v1448 = vadd.f32 %v1419, %v1447
      %1449 = vdwg.mxu0
      %v1450 = vmax.f32 %v1445, 0.0
      %v1451 = vmax.f32 %v1448, 0.0
      %v1452 = vld [vmem:[%s724] sm:$0xff]
      %v1453 = vld [vmem:[%s724 + $0x8] sm:$0xff]
      %v1454 = vld [vmem:[%s724 + $0x10] sm:$0xff]
      %v1455 = vld [vmem:[%s724 + $0x18] sm:$0xff]
      %v1456 = vld [vmem:[%s724 + $0x20] sm:$0xff]
      %v1457 = vld [vmem:[%s724 + $0x28] sm:$0xff]
      %v1458 = vld [vmem:[%s724 + $0x30] sm:$0xff]
      %v1459 = vld [vmem:[%s724 + $0x38] sm:$0xff]
      %v1460 = vld [vmem:[%s727] sm:$0x1]
      %v1462 = vperm.slane %v1460, 0
      %vm1464 = vcmask 523264
      %v1466 = vsel %vm1464, %v1450, 0
      %v1469 = vsel %vm1464, %v1451, 0
      %1471 = vmatpush.msra.mxu0 0.0
      %1472 = vmatpush.msra.mxu0 0.0
      %1473 = vmatpush.msra.mxu0 0.0
      %1474 = vmatpush.msra.mxu0 0.0
      %1475 = vmatpush.msra.mxu0 0.0
      %1476 = vmatpush.msra.mxu0 0.0
      %1477 = vmatpush.msra.mxu0 0.0
      %1478 = vmatpush.msra.mxu0 0.0
      %1479 = vmatpush.msra.mxu0 %v1459
      %1480 = vmatpush.msra.mxu0 %v1458
      %1481 = vmatpush.msra.mxu0 %v1457
      %1482 = vmatpush.msra.mxu0 %v1456
      %1483 = vmatpush.msra.mxu0 %v1455
      %1484 = vmatpush.msra.mxu0 %v1454
      %1485 = vmatpush.msra.mxu0 %v1453
      %1486 = vmatpush.msra.mxu0 %v1452
      %1487 = vmatmul.f32.gmra.mxu0 %v1466
      %v1488 = vpop.f32.mrf.mxu0
      %v1489 = vadd.f32 %v1462, %v1488
      %1490 = vmatmul.f32.gmra.mxu0 %v1469
      %v1491 = vpop.f32.mrf.mxu0
      %v1492 = vadd.f32 %v1462, %v1491
      %1493 = vdwg.mxu0
      %v1494 = vadd.f32 %v1411, %v1489
      %v1495 = vadd.f32 %v1412, %v1492
      %v1496 = vsel %vm769, %v1494, 0.0
      %1497 = vadd.xlane.f32.xlu0 %v1496
      %v1498 = vpop.xlane.xlu0 %1497
      %v1499 = vsel %vm769, %v1495, 0.0
      %1500 = vadd.xlane.f32.xlu0 %v1499
      %v1501 = vpop.xlane.xlu0 %1500
      %v1502 = vmul.f32 %v1498, %v1364
      %v1503 = vmul.f32 %v1501, %v1364
      %v1504 = vsub.f32 %v1494, %v1502
      %v1505 = vsub.f32 %v1495, %v1503
      %v1506 = vmul.f32 %v1504, %v1504
      %v1507 = vmul.f32 %v1505, %v1505
      %v1508 = vsel %vm769, %v1506, 0.0
      %1509 = vadd.xlane.f32.xlu0 %v1508
      %v1510 = vpop.xlane.xlu0 %1509
      %v1511 = vsel %vm769, %v1507, 0.0
      %1512 = vadd.xlane.f32.xlu0 %v1511
      %v1513 = vpop.xlane.xlu0 %1512
      %v1514 = vmul.f32 %v1510, %v1364
      %v1515 = vmul.f32 %v1513, %v1364
      %v1516 = vadd.f32 %v1514, 1e-05
      %v1517 = vadd.f32 %v1515, 1e-05
      %v1518 = vrsqrt.pop %v1516
      %v1519 = vmul.f32 %v1518, %v1516
      %v1520 = vmul.f32 %v1519, %v1518
      %v1521 = vmul.f32 0.5, %v1520
      %v1522 = vsub.f32 1.5, %v1521
      %v1523 = vmul.f32 %v1518, %v1522
      %vm1524 = vweird.f32 %v1516
      %vm1525 = vweird.f32 %v1518
      %vm1526 = vmor %vm1524, %vm1525
      %v1527 = vsel %vm1526, %v1518, %v1523
      %v1528 = vrsqrt.pop %v1517
      %v1529 = vmul.f32 %v1528, %v1517
      %v1530 = vmul.f32 %v1529, %v1528
      %v1531 = vmul.f32 0.5, %v1530
      %v1532 = vsub.f32 1.5, %v1531
      %v1533 = vmul.f32 %v1528, %v1532
      %vm1534 = vweird.f32 %v1517
      %vm1535 = vweird.f32 %v1528
      %vm1536 = vmor %vm1534, %vm1535
      %v1537 = vsel %vm1536, %v1528, %v1533
      %v1538 = vmul.f32 %v1504, %v1527
      %v1539 = vmul.f32 %v1505, %v1537
      %v1541 = vperm.slane %v757, 0
      %v1543 = vmul.f32 %v1538, %v1541
      %v1544 = vmul.f32 %v1539, %v1541
      %v1546 = vperm.slane %v758, 0
      %v1548 = vadd.f32 %v1543, %v1546
      %v1549 = vadd.f32 %v1544, %v1546
      %1550 = vst.msk [vmem:[%s17] sm:$0xff] %vm769, %v1548
      %1551 = vst.msk [vmem:[%s17 + $0x8] sm:$0xff] %vm769, %v1549
      // Predicated region
      $region93: #{act_encoder_forward.1} parent=87 // pred_check
        %p1552 = pneg %p468
      $region94: #{act_encoder_forward.1} parent=87 // pred_check_branch
        %1554 = sbr.rel (%p1552) target = $region96
      $region95: #{act_encoder_forward.1} parent=87 // pred_region
        _
      $region96: #{act_encoder_forward.1} parent=87 // pred_fallthru
        _
      // Predicated region
      $region97: #{act_encoder_forward.1} parent=87 // pred_check
        %p1555 = pneg %p468
      $region98: #{act_encoder_forward.1} parent=87 // pred_check_branch
        %1557 = sbr.rel (%p1555) target = $region100
      $region99: #{act_encoder_forward.1} parent=87 // pred_region
        _
      $region100: #{act_encoder_forward.1} parent=87 // pred_fallthru
        _
    $region88: #{act_encoder_forward.1} parent=5 // pred_fallthru
      _
    %p1558 = scmp.le.s32.totalorder 2, %s23
    // Predicated region
    $region101: #{act_encoder_forward.1} parent=5 // pred_check
      %p1559 = pneg %p1558
    $region102: #{act_encoder_forward.1} parent=5 // pred_check_branch
      %1561 = sbr.rel (%p1559) target = $region104
    $region103: #{act_encoder_forward.1} parent=5 // pred_region
      %s1562 = ssub.s32 %s23, 2
    $region104: #{act_encoder_forward.1} parent=5 // pred_fallthru
      _
  $region6: #{act_encoder_forward.1} parent=0 // loop_footer
    %s27 = sadd.s32 1, %s23
  $region7: #{act_encoder_forward.1} parent=0 // loop_footer_branch
    %22 = sbr.rel target = $region3
  $region8: #{act_encoder_forward.1} parent=0 // loop_exit
    _

</llo_original>
